<compile_context>
chip_gen: v7x
topology: tpu7x:2x2x1
jax: 0.10.0
libtpu: 0.0.40
codegen_flags: <defaults>
</compile_context>

<pallas_src>
import functools

import jax
import jax.numpy as jnp
import numpy as np
from jax.experimental import pallas as pl
from jax.experimental.pallas import tpu as pltpu

_MATMUL_OPERAND_DTYPE = jnp.float32   # bf16 on v6e/v7x if looser tolerance is acceptable
_MAX_IMAGES_PER_STEP = 8              # caps unrolled kernel body size / compile time


# ----------------------------------------------------------------------------
# Fused Pallas kernel
# ----------------------------------------------------------------------------
def _impala_block_kernel(x_ref, w1_ref, b1_ref, w2_ref, b2_ref, out_ref, xp_ref,
                         *, width, guard):
    """One grid step = B_t images in (B_t, C, H*W) layout (H*W on the lane axis).

    xp_ref[b] is a guarded buffer  [ guard zeros | relu activation (H*W) | W+1 zeros ].
    A 3x3 'same' conv then becomes 9 contiguous lane-shifted slices of this buffer fed
    to small (C_out, C_in) @ (C_in, H*W) matmuls; the guard zeros give the top/bottom
    row padding for free, and the left/right column padding is a mask on the kw=0/kw=2
    tap groups (those taps must contribute zero at w==0 / w==W-1 respectively).
    """
    bt, c, s = x_ref.shape
    halo = width + 1

    # Column-validity masks, hoisted out of the per-image loop (tiny, lane-dense).
    col = jax.lax.broadcasted_iota(jnp.int32, (1, s), 1) % width
    not_left = col != 0              # kw == 0 taps contribute nothing at w == 0
    not_right = col != width - 1     # kw == 2 taps contribute nothing at w == W-1

    bias1 = b1_ref[...].astype(jnp.float32)     # (C, 1) -> broadcasts over lanes
    bias2 = b2_ref[...].astype(jnp.float32)

    def conv3x3(b, w_ref, bias):
        """3x3 same-conv of the guarded buffer xp_ref[b] -> (C, H*W) float32."""
        acc = jnp.zeros((c, s), jnp.float32)
        for kw in range(3):
            grp = jnp.zeros((c, s), jnp.float32)
            for kh in range(3):
                start = guard + (kh - 1) * width + (kw - 1)          # static, in-bounds
                src = xp_ref[b, :, start:start + s].astype(_MATMUL_OPERAND_DTYPE)
                wt = w_ref[kh * 3 + kw].astype(_MATMUL_OPERAND_DTYPE)  # (C_out, C_in)
                grp = grp + jnp.dot(wt, src, preferred_element_type=jnp.float32)
            if kw == 0:
                grp = jnp.where(not_left, grp, 0.0)
            elif kw == 2:
                grp = jnp.where(not_right, grp, 0.0)
            acc = acc + grp
        return acc + bias

    for b in range(bt):                              # static unroll; bt is small
        x = x_ref[b].astype(jnp.float32)             # (C, H*W), lane-dense load

        # Border-only zeroing of the two guard strips, done EVERY step (megacore-safe).
        xp_ref[b, :, 0:guard] = jnp.zeros((c, guard), jnp.float32)
        xp_ref[b, :, guard + s:] = jnp.zeros((c, halo), jnp.float32)

        # relu -> conv1 + b1   (interior write is lane-aligned: guard % 128 == 0)
        xp_ref[b, :, guard:guard + s] = jnp.maximum(x, 0.0)
        out1 = conv3x3(b, w1_ref, bias1)

        # relu -> conv2 + b2 + residual (residual uses the pre-ReLU input)
        xp_ref[b, :, guard:guard + s] = jnp.maximum(out1, 0.0)
        out2 = conv3x3(b, w2_ref, bias2)

        out_ref[b] = (out2 + x).astype(out_ref.dtype)   # dense, lane-aligned store


# ----------------------------------------------------------------------------
# Wrapper helpers (VMEM accounting on (8,128)-padded shapes)
# ----------------------------------------------------------------------------
def _round_up(v, m):
    return ((v + m - 1) // m) * m


def _padded_f32_bytes(shape):
    """f32 VMEM footprint with the minor two dims padded to the (8, 128) tile."""
    lead = 1
    for d in shape[:-2]:
        lead *= d
    return lead * _round_up(shape[-2], 8) * _round_up(shape[-1], 128) * 4


def _choose_images_per_step(n, c, s, xp_cols, budget_bytes=12 << 20):
    per_img = (4 * _padded_f32_bytes((1, c, s))        # x + out blocks, double-buffered
               + _padded_f32_bytes((1, c, xp_cols))    # guarded scratch
               + 4 * _padded_f32_bytes((1, c, s)))     # in-flight conv values headroom
    bt = max(1, min(n, budget_bytes // max(per_img, 1), _MAX_IMAGES_PER_STEP))
    if n >= 2:
        bt = min(bt, n // 2)   # keep grid length >= 2 so both v7x TensorCores get work
    bt = max(bt, 1)
    while n % bt:              # largest divisor of n not exceeding the budgeted tile
        bt -= 1
    return bt


def _vmem_limit_bytes(bt, c, s, xp_cols):
    io = 2 * 2 * _padded_f32_bytes((bt, c, s))                       # x + out, 2 buffers
    wts = 2 * (2 * _padded_f32_bytes((9, c, c)) + 2 * _padded_f32_bytes((c, 1)))
    xp = _padded_f32_bytes((bt, c, xp_cols))
    work = 6 * _padded_f32_bytes((bt, c, s))                         # values / spills
    need = io + wts + xp + work
    # generous headroom, clamped below v7x's 64 MiB physical VMEM
    return int(min(max(2 * need, 16 << 20), 48 << 20))


def _fused_block_flat(x3, w1, b1, w2, b2, width):
    n, c, s = x3.shape
    guard = _round_up(width + 1, 128)          # lane-aligned interior offset
    xp_cols = guard + s + (width + 1)
    bt = _choose_images_per_step(n, c, s, xp_cols)
    kernel = functools.partial(_impala_block_kernel, width=width, guard=guard)
    return pl.pallas_call(
        kernel,
        out_shape=jax.ShapeDtypeStruct((n, c, s), x3.dtype),
        grid=(n // bt,),
        in_specs=[
            pl.BlockSpec((bt, c, s), lambda i: (i, 0, 0)),
            pl.BlockSpec((9, c, c), lambda i: (0, 0, 0)),   # constant -> DMA'd once
            pl.BlockSpec((c, 1), lambda i: (0, 0)),
            pl.BlockSpec((9, c, c), lambda i: (0, 0, 0)),
            pl.BlockSpec((c, 1), lambda i: (0, 0)),
        ],
        out_specs=pl.BlockSpec((bt, c, s), lambda i: (i, 0, 0)),
        scratch_shapes=[pltpu.VMEM((bt, c, xp_cols), jnp.float32)],
        compiler_params=pltpu.CompilerParams(
            dimension_semantics=("parallel",),
            vmem_limit_bytes=_vmem_limit_bytes(bt, c, s, xp_cols),
        ),
    )(x3, w1, b1, w2, b2)


# ----------------------------------------------------------------------------
# Parameters
# ----------------------------------------------------------------------------
def init_impala_residual_block_params(key, num_channels):
    """PyTorch-layout params mimicking nn.Conv2d default init (uniform +/- 1/sqrt(fan_in))."""
    k1, k2, k3, k4 = jax.random.split(key, 4)
    bound = 1.0 / np.sqrt(num_channels * 9)
    w1 = jax.random.uniform(k1, (num_channels, num_channels, 3, 3), jnp.float32, -bound, bound)
    b1 = jax.random.uniform(k2, (num_channels,), jnp.float32, -bound, bound)
    w2 = jax.random.uniform(k3, (num_channels, num_channels, 3, 3), jnp.float32, -bound, bound)
    b2 = jax.random.uniform(k4, (num_channels,), jnp.float32, -bound, bound)
    return {"w1": w1, "b1": b1, "w2": w2, "b2": b2}


def prepare_impala_residual_block_params(torch_params):
    """One-time (hoisted) layout conversion: (O, I, 3, 3) -> (9, O, I), tap = kh*3 + kw."""
    def conv_w(w):
        c_out, c_in = w.shape[0], w.shape[1]
        return jnp.transpose(w, (2, 3, 0, 1)).reshape(9, c_out, c_in)

    return {
        "w1": conv_w(torch_params["w1"]),
        "b1": torch_params["b1"].reshape(-1, 1).astype(jnp.float32),
        "w2": conv_w(torch_params["w2"]),
        "b2": torch_params["b2"].reshape(-1, 1).astype(jnp.float32),
    }


@jax.jit
def impala_residual_block(x_nchw, prepared_params):
    """Forward pass of ImpalaResidualBlock (use_bn=False). Input/output are NCHW."""
    n, c, h, w = x_nchw.shape
    x3 = x_nchw.reshape(n, c, h * w).astype(jnp.float32)   # contiguous reshape, NO transpose
    y3 = _fused_block_flat(x3,
                           prepared_params["w1"], prepared_params["b1"],
                           prepared_params["w2"], prepared_params["b2"], w)
    return y3.reshape(n, c, h, w)


# ----------------------------------------------------------------------------
# Pure-JAX reference (for correctness check)
# ----------------------------------------------------------------------------
def _reference_forward(x_nchw, torch_params):
    def conv(x, w, b):
        y = jax.lax.conv_general_dilated(
            x, w, window_strides=(1, 1), padding=((1, 1), (1, 1)),
            dimension_numbers=("NCHW", "OIHW", "NCHW"))
        return y + b[None, :, None, None]

    out = jax.nn.relu(x_nchw)
    out = conv(out, torch_params["w1"], torch_params["b1"])
    out = jax.nn.relu(out)
    out = conv(out, torch_params["w2"], torch_params["b2"])
    return out + x_nchw


if __name__ == "__main__":
    key = jax.random.PRNGKey(0)
    k_x, k_p = jax.random.split(key)

    N, C, H, W = 2, 4, 16, 16
    x = jax.random.normal(k_x, (N, C, H, W), dtype=jnp.float32)

    torch_params = init_impala_residual_block_params(k_p, C)
    params = prepare_impala_residual_block_params(torch_params)   # hoisted, done once

    out = jax.block_until_ready(impala_residual_block(x, params))
    ref = jax.block_until_ready(_reference_forward(x, torch_params))
    np.testing.assert_allclose(np.asarray(out), np.asarray(ref), atol=1e-4, rtol=1e-4)

    print("KERNEL_OK")
</pallas_src>

<mosaic_0001>
module attributes {stable_mosaic.version = 11 : i64} {
  func.func @_impala_block_kernel(%arg0: i32, %arg1: memref<1x4x256xf32, #tpu.memory_space<vmem>>, %arg2: memref<9x4x4xf32, #tpu.memory_space<vmem>>, %arg3: memref<4x1xf32, #tpu.memory_space<vmem>>, %arg4: memref<9x4x4xf32, #tpu.memory_space<vmem>>, %arg5: memref<4x1xf32, #tpu.memory_space<vmem>>, %arg6: memref<1x4x256xf32, #tpu.memory_space<vmem>>, %arg7: memref<1x4x401xf32, #tpu.memory_space<vmem>>) attributes {dimension_semantics = [#tpu.dimension_semantics<parallel>], iteration_bounds = array<i64: 2>, scalar_prefetch = 0 : i64, scratch_operands = 1 : i64, tpu.core_type = #tpu.core_type<tc>, window_params = [{transform_indices = @transform_0, window_bounds = array<i64: 1, 4, 256>}, {pipeline_mode = #tpu.pipeline_mode<synchronous>, transform_indices = @transform_1, window_bounds = array<i64: 9, 4, 4>}, {pipeline_mode = #tpu.pipeline_mode<synchronous>, transform_indices = @transform_2, window_bounds = array<i64: 4, 1>}, {pipeline_mode = #tpu.pipeline_mode<synchronous>, transform_indices = @transform_3, window_bounds = array<i64: 9, 4, 4>}, {pipeline_mode = #tpu.pipeline_mode<synchronous>, transform_indices = @transform_4, window_bounds = array<i64: 4, 1>}, {transform_indices = @transform_5, window_bounds = array<i64: 1, 4, 256>}]} {
    %0 = tpu.iota {dimensions = array<i32: 1>} : vector<1x256xi32>
    %c16_i32 = arith.constant 16 : i32
    %c0_i32 = arith.constant 0 : i32
    %1 = arith.cmpi eq, %c16_i32, %c0_i32 : i32
    %c1_i32 = arith.constant 1 : i32
    %2 = arith.select %1, %c1_i32, %c16_i32 : i32
    %3 = vector.broadcast %2 : i32 to vector<1x256xi32>
    %4 = arith.remsi %0, %3 : vector<1x256xi32>
    %c0_i32_0 = arith.constant 0 : i32
    %5 = vector.broadcast %c0_i32_0 : i32 to vector<1x256xi32>
    %6 = arith.cmpi ne, %4, %5 : vector<1x256xi32>
    %c0_i32_1 = arith.constant 0 : i32
    %7 = vector.broadcast %c0_i32_1 : i32 to vector<1x256xi32>
    %8 = arith.cmpi slt, %4, %7 : vector<1x256xi32>
    %c0_i32_2 = arith.constant 0 : i32
    %9 = arith.cmpi slt, %2, %c0_i32_2 : i32
    %10 = vector.broadcast %9 : i1 to vector<1x256xi1>
    %11 = vector.broadcast %10 : vector<1x256xi1> to vector<1x256xi1>
    %12 = arith.xori %8, %11 : vector<1x256xi1>
    %13 = arith.andi %12, %6 : vector<1x256xi1>
    %14 = vector.broadcast %2 : i32 to vector<1x256xi32>
    %15 = arith.addi %4, %14 : vector<1x256xi32>
    %16 = arith.select %13, %15, %4 : vector<1x256xi1>, vector<1x256xi32>
    %c0_i32_3 = arith.constant 0 : i32
    %17 = vector.broadcast %c0_i32_3 : i32 to vector<1x256xi32>
    %18 = arith.cmpi ne, %16, %17 : vector<1x256xi32>
    %c15_i32 = arith.constant 15 : i32
    %19 = vector.broadcast %c15_i32 : i32 to vector<1x256xi32>
    %20 = arith.cmpi ne, %16, %19 : vector<1x256xi32>
    %c0 = arith.constant 0 : index
    %c0_4 = arith.constant 0 : index
    %21 = vector.load %arg3[%c0, %c0_4] : memref<4x1xf32, #tpu.memory_space<vmem>>, vector<4x1xf32>
    %c0_5 = arith.constant 0 : index
    %c0_6 = arith.constant 0 : index
    %22 = vector.load %arg5[%c0_5, %c0_6] : memref<4x1xf32, #tpu.memory_space<vmem>>, vector<4x1xf32>
    %c0_7 = arith.constant 0 : index
    %c0_8 = arith.constant 0 : index
    %c0_9 = arith.constant 0 : index
    %23 = vector.load %arg1[%c0_7, %c0_8, %c0_9] : memref<1x4x256xf32, #tpu.memory_space<vmem>>, vector<1x4x256xf32>
    %24 = vector.shape_cast %23 : vector<1x4x256xf32> to vector<4x256xf32>
    %cst = arith.constant 0.000000e+00 : f32
    %25 = vector.broadcast %cst : f32 to vector<4x128xf32>
    %c0_10 = arith.constant 0 : index
    %c0_11 = arith.constant 0 : index
    %c0_12 = arith.constant 0 : index
    %26 = vector.load %arg7[%c0_10, %c0_11, %c0_12] : memref<1x4x401xf32, #tpu.memory_space<vmem>>, vector<1x4x128xf32>
    %27 = vector.shape_cast %26 : vector<1x4x128xf32> to vector<4x128xf32>
    %28 = vector.shape_cast %25 : vector<4x128xf32> to vector<1x4x128xf32>
    tpu.vector_store %arg7[%c0_10, %c0_11, %c0_12], %28 {strides = array<i32>} : memref<1x4x401xf32, #tpu.memory_space<vmem>>, vector<1x4x128xf32>,
    %cst_13 = arith.constant 0.000000e+00 : f32
    %29 = vector.broadcast %cst_13 : f32 to vector<4x17xf32>
    %c0_14 = arith.constant 0 : index
    %c0_15 = arith.constant 0 : index
    %c384 = arith.constant 384 : index
    %30 = vector.load %arg7[%c0_14, %c0_15, %c384] : memref<1x4x401xf32, #tpu.memory_space<vmem>>, vector<1x4x17xf32>
    %31 = vector.shape_cast %30 : vector<1x4x17xf32> to vector<4x17xf32>
    %32 = vector.shape_cast %29 : vector<4x17xf32> to vector<1x4x17xf32>
    tpu.vector_store %arg7[%c0_14, %c0_15, %c384], %32 {strides = array<i32>} : memref<1x4x401xf32, #tpu.memory_space<vmem>>, vector<1x4x17xf32>,
    %cst_16 = arith.constant 0.000000e+00 : f32
    %33 = vector.broadcast %cst_16 : f32 to vector<4x256xf32>
    %34 = arith.maximumf %24, %33 : vector<4x256xf32>
    %c0_17 = arith.constant 0 : index
    %c0_18 = arith.constant 0 : index
    %c128 = arith.constant 128 : index
    %35 = vector.load %arg7[%c0_17, %c0_18, %c128] : memref<1x4x401xf32, #tpu.memory_space<vmem>>, vector<1x4x256xf32>
    %36 = vector.shape_cast %35 : vector<1x4x256xf32> to vector<4x256xf32>
    %37 = vector.shape_cast %34 : vector<4x256xf32> to vector<1x4x256xf32>
    tpu.vector_store %arg7[%c0_17, %c0_18, %c128], %37 {strides = array<i32>} : memref<1x4x401xf32, #tpu.memory_space<vmem>>, vector<1x4x256xf32>,
    %cst_19 = arith.constant 0.000000e+00 : f32
    %38 = vector.broadcast %cst_19 : f32 to vector<4x256xf32>
    %cst_20 = arith.constant 0.000000e+00 : f32
    %39 = vector.broadcast %cst_20 : f32 to vector<4x256xf32>
    %c0_21 = arith.constant 0 : index
    %c0_22 = arith.constant 0 : index
    %c111 = arith.constant 111 : index
    %40 = vector.load %arg7[%c0_21, %c0_22, %c111] : memref<1x4x401xf32, #tpu.memory_space<vmem>>, vector<1x4x256xf32>
    %41 = vector.shape_cast %40 : vector<1x4x256xf32> to vector<4x256xf32>
    %c0_23 = arith.constant 0 : index
    %c0_24 = arith.constant 0 : index
    %c0_25 = arith.constant 0 : index
    %42 = vector.load %arg2[%c0_23, %c0_24, %c0_25] : memref<9x4x4xf32, #tpu.memory_space<vmem>>, vector<1x4x4xf32>
    %43 = vector.shape_cast %42 : vector<1x4x4xf32> to vector<4x4xf32>
    %cst_26 = arith.constant dense<0.000000e+00> : vector<4x256xf32>
    %44 = tpu.matmul %43, %41, %cst_26 {dimension_numbers = #tpu.dot_dimension_numbers<[1], [0], [0], [1], [0, 0, 1, 1], [], []>} : vector<4x4xf32>, vector<4x256xf32>, vector<4x256xf32> -> vector<4x256xf32>
    %45 = arith.addf %39, %44 : vector<4x256xf32>
    %c0_27 = arith.constant 0 : index
    %c0_28 = arith.constant 0 : index
    %c127 = arith.constant 127 : index
    %46 = vector.load %arg7[%c0_27, %c0_28, %c127] : memref<1x4x401xf32, #tpu.memory_space<vmem>>, vector<1x4x256xf32>
    %47 = vector.shape_cast %46 : vector<1x4x256xf32> to vector<4x256xf32>
    %c3 = arith.constant 3 : index
    %c0_29 = arith.constant 0 : index
    %c0_30 = arith.constant 0 : index
    %48 = vector.load %arg2[%c3, %c0_29, %c0_30] : memref<9x4x4xf32, #tpu.memory_space<vmem>>, vector<1x4x4xf32>
    %49 = vector.shape_cast %48 : vector<1x4x4xf32> to vector<4x4xf32>
    %cst_31 = arith.constant dense<0.000000e+00> : vector<4x256xf32>
    %50 = tpu.matmul %49, %47, %cst_31 {dimension_numbers = #tpu.dot_dimension_numbers<[1], [0], [0], [1], [0, 0, 1, 1], [], []>} : vector<4x4xf32>, vector<4x256xf32>, vector<4x256xf32> -> vector<4x256xf32>
    %51 = arith.addf %45, %50 : vector<4x256xf32>
    %c0_32 = arith.constant 0 : index
    %c0_33 = arith.constant 0 : index
    %c143 = arith.constant 143 : index
    %52 = vector.load %arg7[%c0_32, %c0_33, %c143] : memref<1x4x401xf32, #tpu.memory_space<vmem>>, vector<1x4x256xf32>
    %53 = vector.shape_cast %52 : vector<1x4x256xf32> to vector<4x256xf32>
    %c6 = arith.constant 6 : index
    %c0_34 = arith.constant 0 : index
    %c0_35 = arith.constant 0 : index
    %54 = vector.load %arg2[%c6, %c0_34, %c0_35] : memref<9x4x4xf32, #tpu.memory_space<vmem>>, vector<1x4x4xf32>
    %55 = vector.shape_cast %54 : vector<1x4x4xf32> to vector<4x4xf32>
    %cst_36 = arith.constant dense<0.000000e+00> : vector<4x256xf32>
    %56 = tpu.matmul %55, %53, %cst_36 {dimension_numbers = #tpu.dot_dimension_numbers<[1], [0], [0], [1], [0, 0, 1, 1], [], []>} : vector<4x4xf32>, vector<4x256xf32>, vector<4x256xf32> -> vector<4x256xf32>
    %57 = arith.addf %51, %56 : vector<4x256xf32>
    %cst_37 = arith.constant 0.000000e+00 : f32
    %58 = vector.shape_cast %18 : vector<1x256xi1> to vector<1x256xi1>
    %59 = vector.broadcast %58 : vector<1x256xi1> to vector<4x256xi1>
    %60 = vector.broadcast %cst_37 : f32 to vector<4x256xf32>
    %61 = arith.select %59, %57, %60 : vector<4x256xi1>, vector<4x256xf32>
    %62 = arith.addf %38, %61 : vector<4x256xf32>
    %cst_38 = arith.constant 0.000000e+00 : f32
    %63 = vector.broadcast %cst_38 : f32 to vector<4x256xf32>
    %c0_39 = arith.constant 0 : index
    %c0_40 = arith.constant 0 : index
    %c112 = arith.constant 112 : index
    %64 = vector.load %arg7[%c0_39, %c0_40, %c112] : memref<1x4x401xf32, #tpu.memory_space<vmem>>, vector<1x4x256xf32>
    %65 = vector.shape_cast %64 : vector<1x4x256xf32> to vector<4x256xf32>
    %c1 = arith.constant 1 : index
    %c0_41 = arith.constant 0 : index
    %c0_42 = arith.constant 0 : index
    %66 = vector.load %arg2[%c1, %c0_41, %c0_42] : memref<9x4x4xf32, #tpu.memory_space<vmem>>, vector<1x4x4xf32>
    %67 = vector.shape_cast %66 : vector<1x4x4xf32> to vector<4x4xf32>
    %cst_43 = arith.constant dense<0.000000e+00> : vector<4x256xf32>
    %68 = tpu.matmul %67, %65, %cst_43 {dimension_numbers = #tpu.dot_dimension_numbers<[1], [0], [0], [1], [0, 0, 1, 1], [], []>} : vector<4x4xf32>, vector<4x256xf32>, vector<4x256xf32> -> vector<4x256xf32>
    %69 = arith.addf %63, %68 : vector<4x256xf32>
    %c0_44 = arith.constant 0 : index
    %c0_45 = arith.constant 0 : index
    %c128_46 = arith.constant 128 : index
    %70 = vector.load %arg7[%c0_44, %c0_45, %c128_46] : memref<1x4x401xf32, #tpu.memory_space<vmem>>, vector<1x4x256xf32>
    %71 = vector.shape_cast %70 : vector<1x4x256xf32> to vector<4x256xf32>
    %c4 = arith.constant 4 : index
    %c0_47 = arith.constant 0 : index
    %c0_48 = arith.constant 0 : index
    %72 = vector.load %arg2[%c4, %c0_47, %c0_48] : memref<9x4x4xf32, #tpu.memory_space<vmem>>, vector<1x4x4xf32>
    %73 = vector.shape_cast %72 : vector<1x4x4xf32> to vector<4x4xf32>
    %cst_49 = arith.constant dense<0.000000e+00> : vector<4x256xf32>
    %74 = tpu.matmul %73, %71, %cst_49 {dimension_numbers = #tpu.dot_dimension_numbers<[1], [0], [0], [1], [0, 0, 1, 1], [], []>} : vector<4x4xf32>, vector<4x256xf32>, vector<4x256xf32> -> vector<4x256xf32>
    %75 = arith.addf %69, %74 : vector<4x256xf32>
    %c0_50 = arith.constant 0 : index
    %c0_51 = arith.constant 0 : index
    %c144 = arith.constant 144 : index
    %76 = vector.load %arg7[%c0_50, %c0_51, %c144] : memref<1x4x401xf32, #tpu.memory_space<vmem>>, vector<1x4x256xf32>
    %77 = vector.shape_cast %76 : vector<1x4x256xf32> to vector<4x256xf32>
    %c7 = arith.constant 7 : index
    %c0_52 = arith.constant 0 : index
    %c0_53 = arith.constant 0 : index
    %78 = vector.load %arg2[%c7, %c0_52, %c0_53] : memref<9x4x4xf32, #tpu.memory_space<vmem>>, vector<1x4x4xf32>
    %79 = vector.shape_cast %78 : vector<1x4x4xf32> to vector<4x4xf32>
    %cst_54 = arith.constant dense<0.000000e+00> : vector<4x256xf32>
    %80 = tpu.matmul %79, %77, %cst_54 {dimension_numbers = #tpu.dot_dimension_numbers<[1], [0], [0], [1], [0, 0, 1, 1], [], []>} : vector<4x4xf32>, vector<4x256xf32>, vector<4x256xf32> -> vector<4x256xf32>
    %81 = arith.addf %75, %80 : vector<4x256xf32>
    %82 = arith.addf %62, %81 : vector<4x256xf32>
    %cst_55 = arith.constant 0.000000e+00 : f32
    %83 = vector.broadcast %cst_55 : f32 to vector<4x256xf32>
    %c0_56 = arith.constant 0 : index
    %c0_57 = arith.constant 0 : index
    %c113 = arith.constant 113 : index
    %84 = vector.load %arg7[%c0_56, %c0_57, %c113] : memref<1x4x401xf32, #tpu.memory_space<vmem>>, vector<1x4x256xf32>
    %85 = vector.shape_cast %84 : vector<1x4x256xf32> to vector<4x256xf32>
    %c2 = arith.constant 2 : index
    %c0_58 = arith.constant 0 : index
    %c0_59 = arith.constant 0 : index
    %86 = vector.load %arg2[%c2, %c0_58, %c0_59] : memref<9x4x4xf32, #tpu.memory_space<vmem>>, vector<1x4x4xf32>
    %87 = vector.shape_cast %86 : vector<1x4x4xf32> to vector<4x4xf32>
    %cst_60 = arith.constant dense<0.000000e+00> : vector<4x256xf32>
    %88 = tpu.matmul %87, %85, %cst_60 {dimension_numbers = #tpu.dot_dimension_numbers<[1], [0], [0], [1], [0, 0, 1, 1], [], []>} : vector<4x4xf32>, vector<4x256xf32>, vector<4x256xf32> -> vector<4x256xf32>
    %89 = arith.addf %83, %88 : vector<4x256xf32>
    %c0_61 = arith.constant 0 : index
    %c0_62 = arith.constant 0 : index
    %c129 = arith.constant 129 : index
    %90 = vector.load %arg7[%c0_61, %c0_62, %c129] : memref<1x4x401xf32, #tpu.memory_space<vmem>>, vector<1x4x256xf32>
    %91 = vector.shape_cast %90 : vector<1x4x256xf32> to vector<4x256xf32>
    %c5 = arith.constant 5 : index
    %c0_63 = arith.constant 0 : index
    %c0_64 = arith.constant 0 : index
    %92 = vector.load %arg2[%c5, %c0_63, %c0_64] : memref<9x4x4xf32, #tpu.memory_space<vmem>>, vector<1x4x4xf32>
    %93 = vector.shape_cast %92 : vector<1x4x4xf32> to vector<4x4xf32>
    %cst_65 = arith.constant dense<0.000000e+00> : vector<4x256xf32>
    %94 = tpu.matmul %93, %91, %cst_65 {dimension_numbers = #tpu.dot_dimension_numbers<[1], [0], [0], [1], [0, 0, 1, 1], [], []>} : vector<4x4xf32>, vector<4x256xf32>, vector<4x256xf32> -> vector<4x256xf32>
    %95 = arith.addf %89, %94 : vector<4x256xf32>
    %c0_66 = arith.constant 0 : index
    %c0_67 = arith.constant 0 : index
    %c145 = arith.constant 145 : index
    %96 = vector.load %arg7[%c0_66, %c0_67, %c145] : memref<1x4x401xf32, #tpu.memory_space<vmem>>, vector<1x4x256xf32>
    %97 = vector.shape_cast %96 : vector<1x4x256xf32> to vector<4x256xf32>
    %c8 = arith.constant 8 : index
    %c0_68 = arith.constant 0 : index
    %c0_69 = arith.constant 0 : index
    %98 = vector.load %arg2[%c8, %c0_68, %c0_69] : memref<9x4x4xf32, #tpu.memory_space<vmem>>, vector<1x4x4xf32>
    %99 = vector.shape_cast %98 : vector<1x4x4xf32> to vector<4x4xf32>
    %cst_70 = arith.constant dense<0.000000e+00> : vector<4x256xf32>
    %100 = tpu.matmul %99, %97, %cst_70 {dimension_numbers = #tpu.dot_dimension_numbers<[1], [0], [0], [1], [0, 0, 1, 1], [], []>} : vector<4x4xf32>, vector<4x256xf32>, vector<4x256xf32> -> vector<4x256xf32>
    %101 = arith.addf %95, %100 : vector<4x256xf32>
    %cst_71 = arith.constant 0.000000e+00 : f32
    %102 = vector.shape_cast %20 : vector<1x256xi1> to vector<1x256xi1>
    %103 = vector.broadcast %102 : vector<1x256xi1> to vector<4x256xi1>
    %104 = vector.broadcast %cst_71 : f32 to vector<4x256xf32>
    %105 = arith.select %103, %101, %104 : vector<4x256xi1>, vector<4x256xf32>
    %106 = arith.addf %82, %105 : vector<4x256xf32>
    %107 = vector.broadcast %21 : vector<4x1xf32> to vector<4x256xf32>
    %108 = arith.addf %106, %107 : vector<4x256xf32>
    %cst_72 = arith.constant 0.000000e+00 : f32
    %109 = vector.broadcast %cst_72 : f32 to vector<4x256xf32>
    %110 = arith.maximumf %108, %109 : vector<4x256xf32>
    %c0_73 = arith.constant 0 : index
    %c0_74 = arith.constant 0 : index
    %c128_75 = arith.constant 128 : index
    %111 = vector.load %arg7[%c0_73, %c0_74, %c128_75] : memref<1x4x401xf32, #tpu.memory_space<vmem>>, vector<1x4x256xf32>
    %112 = vector.shape_cast %111 : vector<1x4x256xf32> to vector<4x256xf32>
    %113 = vector.shape_cast %110 : vector<4x256xf32> to vector<1x4x256xf32>
    tpu.vector_store %arg7[%c0_73, %c0_74, %c128_75], %113 {strides = array<i32>} : memref<1x4x401xf32, #tpu.memory_space<vmem>>, vector<1x4x256xf32>,
    %cst_76 = arith.constant 0.000000e+00 : f32
    %114 = vector.broadcast %cst_76 : f32 to vector<4x256xf32>
    %cst_77 = arith.constant 0.000000e+00 : f32
    %115 = vector.broadcast %cst_77 : f32 to vector<4x256xf32>
    %c0_78 = arith.constant 0 : index
    %c0_79 = arith.constant 0 : index
    %c111_80 = arith.constant 111 : index
    %116 = vector.load %arg7[%c0_78, %c0_79, %c111_80] : memref<1x4x401xf32, #tpu.memory_space<vmem>>, vector<1x4x256xf32>
    %117 = vector.shape_cast %116 : vector<1x4x256xf32> to vector<4x256xf32>
    %c0_81 = arith.constant 0 : index
    %c0_82 = arith.constant 0 : index
    %c0_83 = arith.constant 0 : index
    %118 = vector.load %arg4[%c0_81, %c0_82, %c0_83] : memref<9x4x4xf32, #tpu.memory_space<vmem>>, vector<1x4x4xf32>
    %119 = vector.shape_cast %118 : vector<1x4x4xf32> to vector<4x4xf32>
    %cst_84 = arith.constant dense<0.000000e+00> : vector<4x256xf32>
    %120 = tpu.matmul %119, %117, %cst_84 {dimension_numbers = #tpu.dot_dimension_numbers<[1], [0], [0], [1], [0, 0, 1, 1], [], []>} : vector<4x4xf32>, vector<4x256xf32>, vector<4x256xf32> -> vector<4x256xf32>
    %121 = arith.addf %115, %120 : vector<4x256xf32>
    %c0_85 = arith.constant 0 : index
    %c0_86 = arith.constant 0 : index
    %c127_87 = arith.constant 127 : index
    %122 = vector.load %arg7[%c0_85, %c0_86, %c127_87] : memref<1x4x401xf32, #tpu.memory_space<vmem>>, vector<1x4x256xf32>
    %123 = vector.shape_cast %122 : vector<1x4x256xf32> to vector<4x256xf32>
    %c3_88 = arith.constant 3 : index
    %c0_89 = arith.constant 0 : index
    %c0_90 = arith.constant 0 : index
    %124 = vector.load %arg4[%c3_88, %c0_89, %c0_90] : memref<9x4x4xf32, #tpu.memory_space<vmem>>, vector<1x4x4xf32>
    %125 = vector.shape_cast %124 : vector<1x4x4xf32> to vector<4x4xf32>
    %cst_91 = arith.constant dense<0.000000e+00> : vector<4x256xf32>
    %126 = tpu.matmul %125, %123, %cst_91 {dimension_numbers = #tpu.dot_dimension_numbers<[1], [0], [0], [1], [0, 0, 1, 1], [], []>} : vector<4x4xf32>, vector<4x256xf32>, vector<4x256xf32> -> vector<4x256xf32>
    %127 = arith.addf %121, %126 : vector<4x256xf32>
    %c0_92 = arith.constant 0 : index
    %c0_93 = arith.constant 0 : index
    %c143_94 = arith.constant 143 : index
    %128 = vector.load %arg7[%c0_92, %c0_93, %c143_94] : memref<1x4x401xf32, #tpu.memory_space<vmem>>, vector<1x4x256xf32>
    %129 = vector.shape_cast %128 : vector<1x4x256xf32> to vector<4x256xf32>
    %c6_95 = arith.constant 6 : index
    %c0_96 = arith.constant 0 : index
    %c0_97 = arith.constant 0 : index
    %130 = vector.load %arg4[%c6_95, %c0_96, %c0_97] : memref<9x4x4xf32, #tpu.memory_space<vmem>>, vector<1x4x4xf32>
    %131 = vector.shape_cast %130 : vector<1x4x4xf32> to vector<4x4xf32>
    %cst_98 = arith.constant dense<0.000000e+00> : vector<4x256xf32>
    %132 = tpu.matmul %131, %129, %cst_98 {dimension_numbers = #tpu.dot_dimension_numbers<[1], [0], [0], [1], [0, 0, 1, 1], [], []>} : vector<4x4xf32>, vector<4x256xf32>, vector<4x256xf32> -> vector<4x256xf32>
    %133 = arith.addf %127, %132 : vector<4x256xf32>
    %cst_99 = arith.constant 0.000000e+00 : f32
    %134 = vector.shape_cast %18 : vector<1x256xi1> to vector<1x256xi1>
    %135 = vector.broadcast %134 : vector<1x256xi1> to vector<4x256xi1>
    %136 = vector.broadcast %cst_99 : f32 to vector<4x256xf32>
    %137 = arith.select %135, %133, %136 : vector<4x256xi1>, vector<4x256xf32>
    %138 = arith.addf %114, %137 : vector<4x256xf32>
    %cst_100 = arith.constant 0.000000e+00 : f32
    %139 = vector.broadcast %cst_100 : f32 to vector<4x256xf32>
    %c0_101 = arith.constant 0 : index
    %c0_102 = arith.constant 0 : index
    %c112_103 = arith.constant 112 : index
    %140 = vector.load %arg7[%c0_101, %c0_102, %c112_103] : memref<1x4x401xf32, #tpu.memory_space<vmem>>, vector<1x4x256xf32>
    %141 = vector.shape_cast %140 : vector<1x4x256xf32> to vector<4x256xf32>
    %c1_104 = arith.constant 1 : index
    %c0_105 = arith.constant 0 : index
    %c0_106 = arith.constant 0 : index
    %142 = vector.load %arg4[%c1_104, %c0_105, %c0_106] : memref<9x4x4xf32, #tpu.memory_space<vmem>>, vector<1x4x4xf32>
    %143 = vector.shape_cast %142 : vector<1x4x4xf32> to vector<4x4xf32>
    %cst_107 = arith.constant dense<0.000000e+00> : vector<4x256xf32>
    %144 = tpu.matmul %143, %141, %cst_107 {dimension_numbers = #tpu.dot_dimension_numbers<[1], [0], [0], [1], [0, 0, 1, 1], [], []>} : vector<4x4xf32>, vector<4x256xf32>, vector<4x256xf32> -> vector<4x256xf32>
    %145 = arith.addf %139, %144 : vector<4x256xf32>
    %c0_108 = arith.constant 0 : index
    %c0_109 = arith.constant 0 : index
    %c128_110 = arith.constant 128 : index
    %146 = vector.load %arg7[%c0_108, %c0_109, %c128_110] : memref<1x4x401xf32, #tpu.memory_space<vmem>>, vector<1x4x256xf32>
    %147 = vector.shape_cast %146 : vector<1x4x256xf32> to vector<4x256xf32>
    %c4_111 = arith.constant 4 : index
    %c0_112 = arith.constant 0 : index
    %c0_113 = arith.constant 0 : index
    %148 = vector.load %arg4[%c4_111, %c0_112, %c0_113] : memref<9x4x4xf32, #tpu.memory_space<vmem>>, vector<1x4x4xf32>
    %149 = vector.shape_cast %148 : vector<1x4x4xf32> to vector<4x4xf32>
    %cst_114 = arith.constant dense<0.000000e+00> : vector<4x256xf32>
    %150 = tpu.matmul %149, %147, %cst_114 {dimension_numbers = #tpu.dot_dimension_numbers<[1], [0], [0], [1], [0, 0, 1, 1], [], []>} : vector<4x4xf32>, vector<4x256xf32>, vector<4x256xf32> -> vector<4x256xf32>
    %151 = arith.addf %145, %150 : vector<4x256xf32>
    %c0_115 = arith.constant 0 : index
    %c0_116 = arith.constant 0 : index
    %c144_117 = arith.constant 144 : index
    %152 = vector.load %arg7[%c0_115, %c0_116, %c144_117] : memref<1x4x401xf32, #tpu.memory_space<vmem>>, vector<1x4x256xf32>
    %153 = vector.shape_cast %152 : vector<1x4x256xf32> to vector<4x256xf32>
    %c7_118 = arith.constant 7 : index
    %c0_119 = arith.constant 0 : index
    %c0_120 = arith.constant 0 : index
    %154 = vector.load %arg4[%c7_118, %c0_119, %c0_120] : memref<9x4x4xf32, #tpu.memory_space<vmem>>, vector<1x4x4xf32>
    %155 = vector.shape_cast %154 : vector<1x4x4xf32> to vector<4x4xf32>
    %cst_121 = arith.constant dense<0.000000e+00> : vector<4x256xf32>
    %156 = tpu.matmul %155, %153, %cst_121 {dimension_numbers = #tpu.dot_dimension_numbers<[1], [0], [0], [1], [0, 0, 1, 1], [], []>} : vector<4x4xf32>, vector<4x256xf32>, vector<4x256xf32> -> vector<4x256xf32>
    %157 = arith.addf %151, %156 : vector<4x256xf32>
    %158 = arith.addf %138, %157 : vector<4x256xf32>
    %cst_122 = arith.constant 0.000000e+00 : f32
    %159 = vector.broadcast %cst_122 : f32 to vector<4x256xf32>
    %c0_123 = arith.constant 0 : index
    %c0_124 = arith.constant 0 : index
    %c113_125 = arith.constant 113 : index
    %160 = vector.load %arg7[%c0_123, %c0_124, %c113_125] : memref<1x4x401xf32, #tpu.memory_space<vmem>>, vector<1x4x256xf32>
    %161 = vector.shape_cast %160 : vector<1x4x256xf32> to vector<4x256xf32>
    %c2_126 = arith.constant 2 : index
    %c0_127 = arith.constant 0 : index
    %c0_128 = arith.constant 0 : index
    %162 = vector.load %arg4[%c2_126, %c0_127, %c0_128] : memref<9x4x4xf32, #tpu.memory_space<vmem>>, vector<1x4x4xf32>
    %163 = vector.shape_cast %162 : vector<1x4x4xf32> to vector<4x4xf32>
    %cst_129 = arith.constant dense<0.000000e+00> : vector<4x256xf32>
    %164 = tpu.matmul %163, %161, %cst_129 {dimension_numbers = #tpu.dot_dimension_numbers<[1], [0], [0], [1], [0, 0, 1, 1], [], []>} : vector<4x4xf32>, vector<4x256xf32>, vector<4x256xf32> -> vector<4x256xf32>
    %165 = arith.addf %159, %164 : vector<4x256xf32>
    %c0_130 = arith.constant 0 : index
    %c0_131 = arith.constant 0 : index
    %c129_132 = arith.constant 129 : index
    %166 = vector.load %arg7[%c0_130, %c0_131, %c129_132] : memref<1x4x401xf32, #tpu.memory_space<vmem>>, vector<1x4x256xf32>
    %167 = vector.shape_cast %166 : vector<1x4x256xf32> to vector<4x256xf32>
    %c5_133 = arith.constant 5 : index
    %c0_134 = arith.constant 0 : index
    %c0_135 = arith.constant 0 : index
    %168 = vector.load %arg4[%c5_133, %c0_134, %c0_135] : memref<9x4x4xf32, #tpu.memory_space<vmem>>, vector<1x4x4xf32>
    %169 = vector.shape_cast %168 : vector<1x4x4xf32> to vector<4x4xf32>
    %cst_136 = arith.constant dense<0.000000e+00> : vector<4x256xf32>
    %170 = tpu.matmul %169, %167, %cst_136 {dimension_numbers = #tpu.dot_dimension_numbers<[1], [0], [0], [1], [0, 0, 1, 1], [], []>} : vector<4x4xf32>, vector<4x256xf32>, vector<4x256xf32> -> vector<4x256xf32>
    %171 = arith.addf %165, %170 : vector<4x256xf32>
    %c0_137 = arith.constant 0 : index
    %c0_138 = arith.constant 0 : index
    %c145_139 = arith.constant 145 : index
    %172 = vector.load %arg7[%c0_137, %c0_138, %c145_139] : memref<1x4x401xf32, #tpu.memory_space<vmem>>, vector<1x4x256xf32>
    %173 = vector.shape_cast %172 : vector<1x4x256xf32> to vector<4x256xf32>
    %c8_140 = arith.constant 8 : index
    %c0_141 = arith.constant 0 : index
    %c0_142 = arith.constant 0 : index
    %174 = vector.load %arg4[%c8_140, %c0_141, %c0_142] : memref<9x4x4xf32, #tpu.memory_space<vmem>>, vector<1x4x4xf32>
    %175 = vector.shape_cast %174 : vector<1x4x4xf32> to vector<4x4xf32>
    %cst_143 = arith.constant dense<0.000000e+00> : vector<4x256xf32>
    %176 = tpu.matmul %175, %173, %cst_143 {dimension_numbers = #tpu.dot_dimension_numbers<[1], [0], [0], [1], [0, 0, 1, 1], [], []>} : vector<4x4xf32>, vector<4x256xf32>, vector<4x256xf32> -> vector<4x256xf32>
    %177 = arith.addf %171, %176 : vector<4x256xf32>
    %cst_144 = arith.constant 0.000000e+00 : f32
    %178 = vector.shape_cast %20 : vector<1x256xi1> to vector<1x256xi1>
    %179 = vector.broadcast %178 : vector<1x256xi1> to vector<4x256xi1>
    %180 = vector.broadcast %cst_144 : f32 to vector<4x256xf32>
    %181 = arith.select %179, %177, %180 : vector<4x256xi1>, vector<4x256xf32>
    %182 = arith.addf %158, %181 : vector<4x256xf32>
    %183 = vector.broadcast %22 : vector<4x1xf32> to vector<4x256xf32>
    %184 = arith.addf %182, %183 : vector<4x256xf32>
    %185 = arith.addf %184, %24 : vector<4x256xf32>
    %c0_145 = arith.constant 0 : index
    %c0_146 = arith.constant 0 : index
    %c0_147 = arith.constant 0 : index
    %186 = vector.load %arg6[%c0_145, %c0_146, %c0_147] : memref<1x4x256xf32, #tpu.memory_space<vmem>>, vector<1x4x256xf32>
    %187 = vector.shape_cast %186 : vector<1x4x256xf32> to vector<4x256xf32>
    %188 = vector.shape_cast %185 : vector<4x256xf32> to vector<1x4x256xf32>
    tpu.vector_store %arg6[%c0_145, %c0_146, %c0_147], %188 {strides = array<i32>} : memref<1x4x256xf32, #tpu.memory_space<vmem>>, vector<1x4x256xf32>,
    return
  }
  func.func @transform_0(%arg0: i32) -> (i32, i32, i32) {
    %c0_i32 = arith.constant 0 : i32
    %c0_i32_0 = arith.constant 0 : i32
    %c0_i32_1 = arith.constant 0 : i32
    return %arg0, %c0_i32, %c0_i32_0 : i32, i32, i32
  }
  func.func @transform_1(%arg0: i32) -> (i32, i32, i32) {
    %c0_i32 = arith.constant 0 : i32
    %c0_i32_0 = arith.constant 0 : i32
    %c0_i32_1 = arith.constant 0 : i32
    %c0_i32_2 = arith.constant 0 : i32
    return %c0_i32, %c0_i32_0, %c0_i32_1 : i32, i32, i32
  }
  func.func @transform_2(%arg0: i32) -> (i32, i32) {
    %c0_i32 = arith.constant 0 : i32
    %c0_i32_0 = arith.constant 0 : i32
    %c0_i32_1 = arith.constant 0 : i32
    return %c0_i32, %c0_i32_0 : i32, i32
  }
  func.func @transform_3(%arg0: i32) -> (i32, i32, i32) {
    %c0_i32 = arith.constant 0 : i32
    %c0_i32_0 = arith.constant 0 : i32
    %c0_i32_1 = arith.constant 0 : i32
    %c0_i32_2 = arith.constant 0 : i32
    return %c0_i32, %c0_i32_0, %c0_i32_1 : i32, i32, i32
  }
  func.func @transform_4(%arg0: i32) -> (i32, i32) {
    %c0_i32 = arith.constant 0 : i32
    %c0_i32_0 = arith.constant 0 : i32
    %c0_i32_1 = arith.constant 0 : i32
    return %c0_i32, %c0_i32_0 : i32, i32
  }
  func.func @transform_5(%arg0: i32) -> (i32, i32, i32) {
    %c0_i32 = arith.constant 0 : i32
    %c0_i32_0 = arith.constant 0 : i32
    %c0_i32_1 = arith.constant 0 : i32
    return %arg0, %c0_i32, %c0_i32_0 : i32, i32, i32
  }
}

</mosaic_0001>

<llo_original>
// kernel: impala_residual_block.1
$region0: #{impala_residual_block.1}
  #allocation0 [shape = 'u32[]', space=smem, size = 0x4, offset = 0x4, fixed_abs, tag = 'smem constant byte address 0x4 - core index']
  #allocation1 [shape = 'u32[144,128]{1,0:T(1,128)}', space=vmem, size = 0x12000, scoped, tag = 'internal scratch']
  #allocation2 [shape = 'f32[1,4,401]{2,1,0:T(4,128)}', space=vmem, size = 0x2000, scoped, tag = 'scratch operand']
  %s0 = inlined_call_operand.vmem [shape: f32[2,4,256], index: 0, kind: input, shape index: {}]
  %s1 = inlined_call_operand.vmem [shape: f32[9,4,4], index: 1, kind: input, shape index: {}]
  %s2 = inlined_call_operand.vmem [shape: f32[4,1], index: 2, kind: input, shape index: {}]
  %s3 = inlined_call_operand.vmem [shape: f32[9,4,4], index: 3, kind: input, shape index: {}]
  %s4 = inlined_call_operand.vmem [shape: f32[4,1], index: 4, kind: input, shape index: {}]
  %s5 = inlined_call_operand.vmem [shape: f32[2,4,256], index: 5, kind: output, shape index: {}]
  %s6 = sld [smem:[#allocation0]]
  $region53: #{impala_residual_block.1} parent=0
    _
  %s8 = ssub.s32 1, %s6
  %s9 = scalar_select 0, %s8, %s6
  loop: start=0, step=1, limit=4
  $region2: #{impala_residual_block.1} parent=0 // loop_pre_header
    _
  $region3: #{impala_residual_block.1} parent=0 // loop_header
    %s11 = sphi 0, %s15
    %p12 = scmp.ge.s32.totalorder %s11, 4
    %s21 = sphi 0, %s23
    %s24 = sphi 0, %s21
    %s25 = sphi 0, %s24
    %s41 = sphi 0, %s25
    %s45 = sphi 0, %s45
    %s47 = sphi 0, %s45
    %s48 = sphi 0, %s47
    %s62 = sphi 0, %s48
    %s66 = sphi 0, %s66
    %s68 = sphi 0, %s66
    %s69 = sphi 0, %s68
    %s83 = sphi 0, %s69
    %s87 = sphi 0, %s87
    %s89 = sphi 0, %s87
    %s90 = sphi 0, %s89
    %s104 = sphi 0, %s90
    %s108 = sphi 0, %s108
    %s110 = sphi 0, %s108
    %s111 = sphi 0, %s110
    %s125 = sphi 0, %s111
    %s131 = sphi 0, %s133
    %s134 = sphi 0, %s131
    %s135 = sphi 0, %s134
    %s151 = sphi 0, %s135
  $region4: #{impala_residual_block.1} parent=0 // loop_header_branch
    %14 = sbr.rel (%p12) target = $region8
  $region5: #{impala_residual_block.1} parent=0 // loop_body
    %s16 = ssub.s32 %s11, 1
    %s17 = ssub.s32 %s11, 2
    %s18 = sadd.s32 %s11, 1
    %s19 = ssub.s32 %s11, %s18
    %p20 = scmp.eq.s32.totalorder %s19, 0
    %s22 = sadd.s32 %s21, 1
    %s23 = scalar_select %p20, %s21, %s22
    %p26 = pneg %p20
    %p27 = scmp.eq.s32.totalorder %s11, 1
    %p28 = por %p26, %p27
    %p29 = scmp.ne.s32.totalorder %s21, %s24
    %p30 = scmp.eq.s32.totalorder %s11, 0
    %p31 = por %p29, %p30
    %p32 = scmp.ne.s32.totalorder %s21, %s24
    %p33 = scmp.eq.s32.totalorder %s16, 1
    %p34 = por %p32, %p33
    %p35 = scmp.ne.s32.totalorder %s24, %s25
    %p36 = scmp.eq.s32.totalorder %s16, 0
    %p37 = por %p35, %p36
    %p38 = scmp.ne.s32.totalorder %s24, %s25
    %p39 = scmp.eq.s32.totalorder %s17, 1
    %p40 = por %p38, %p39
    %p42 = scmp.ne.s32.totalorder %s25, %s41
    %p43 = scmp.eq.s32.totalorder %s17, 0
    %p44 = por %p42, %p43
    %s46 = sadd.s32 %s45, 1
    %p49 = scmp.eq.s32.totalorder %s11, 1
    %p50 = scmp.ne.s32.totalorder %s45, %s47
    %p51 = scmp.eq.s32.totalorder %s11, 0
    %p52 = por %p50, %p51
    %p53 = scmp.ne.s32.totalorder %s45, %s47
    %p54 = scmp.eq.s32.totalorder %s16, 1
    %p55 = por %p53, %p54
    %p56 = scmp.ne.s32.totalorder %s47, %s48
    %p57 = scmp.eq.s32.totalorder %s16, 0
    %p58 = por %p56, %p57
    %p59 = scmp.ne.s32.totalorder %s47, %s48
    %p60 = scmp.eq.s32.totalorder %s17, 1
    %p61 = por %p59, %p60
    %p63 = scmp.ne.s32.totalorder %s48, %s62
    %p64 = scmp.eq.s32.totalorder %s17, 0
    %p65 = por %p63, %p64
    %s67 = sadd.s32 %s66, 1
    %p70 = scmp.eq.s32.totalorder %s11, 1
    %p71 = scmp.ne.s32.totalorder %s66, %s68
    %p72 = scmp.eq.s32.totalorder %s11, 0
    %p73 = por %p71, %p72
    %p74 = scmp.ne.s32.totalorder %s66, %s68
    %p75 = scmp.eq.s32.totalorder %s16, 1
    %p76 = por %p74, %p75
    %p77 = scmp.ne.s32.totalorder %s68, %s69
    %p78 = scmp.eq.s32.totalorder %s16, 0
    %p79 = por %p77, %p78
    %p80 = scmp.ne.s32.totalorder %s68, %s69
    %p81 = scmp.eq.s32.totalorder %s17, 1
    %p82 = por %p80, %p81
    %p84 = scmp.ne.s32.totalorder %s69, %s83
    %p85 = scmp.eq.s32.totalorder %s17, 0
    %p86 = por %p84, %p85
    %s88 = sadd.s32 %s87, 1
    %p91 = scmp.eq.s32.totalorder %s11, 1
    %p92 = scmp.ne.s32.totalorder %s87, %s89
    %p93 = scmp.eq.s32.totalorder %s11, 0
    %p94 = por %p92, %p93
    %p95 = scmp.ne.s32.totalorder %s87, %s89
    %p96 = scmp.eq.s32.totalorder %s16, 1
    %p97 = por %p95, %p96
    %p98 = scmp.ne.s32.totalorder %s89, %s90
    %p99 = scmp.eq.s32.totalorder %s16, 0
    %p100 = por %p98, %p99
    %p101 = scmp.ne.s32.totalorder %s89, %s90
    %p102 = scmp.eq.s32.totalorder %s17, 1
    %p103 = por %p101, %p102
    %p105 = scmp.ne.s32.totalorder %s90, %s104
    %p106 = scmp.eq.s32.totalorder %s17, 0
    %p107 = por %p105, %p106
    %s109 = sadd.s32 %s108, 1
    %p112 = scmp.eq.s32.totalorder %s11, 1
    %p113 = scmp.ne.s32.totalorder %s108, %s110
    %p114 = scmp.eq.s32.totalorder %s11, 0
    %p115 = por %p113, %p114
    %p116 = scmp.ne.s32.totalorder %s108, %s110
    %p117 = scmp.eq.s32.totalorder %s16, 1
    %p118 = por %p116, %p117
    %p119 = scmp.ne.s32.totalorder %s110, %s111
    %p120 = scmp.eq.s32.totalorder %s16, 0
    %p121 = por %p119, %p120
    %p122 = scmp.ne.s32.totalorder %s110, %s111
    %p123 = scmp.eq.s32.totalorder %s17, 1
    %p124 = por %p122, %p123
    %p126 = scmp.ne.s32.totalorder %s111, %s125
    %p127 = scmp.eq.s32.totalorder %s17, 0
    %p128 = por %p126, %p127
    %s129 = ssub.s32 %s11, %s18
    %p130 = scmp.eq.s32.totalorder %s129, 0
    %s132 = sadd.s32 %s131, 1
    %s133 = scalar_select %p130, %s131, %s132
    %p136 = pneg %p130
    %p137 = scmp.eq.s32.totalorder %s11, 1
    %p138 = por %p136, %p137
    %p139 = scmp.ne.s32.totalorder %s131, %s134
    %p140 = scmp.eq.s32.totalorder %s11, 0
    %p141 = por %p139, %p140
    %p142 = scmp.ne.s32.totalorder %s131, %s134
    %p143 = scmp.eq.s32.totalorder %s16, 1
    %p144 = por %p142, %p143
    %p145 = scmp.ne.s32.totalorder %s134, %s135
    %p146 = scmp.eq.s32.totalorder %s16, 0
    %p147 = por %p145, %p146
    %p148 = scmp.ne.s32.totalorder %s134, %s135
    %p149 = scmp.eq.s32.totalorder %s17, 1
    %p150 = por %p148, %p149
    %p152 = scmp.ne.s32.totalorder %s135, %s151
    %p153 = scmp.eq.s32.totalorder %s17, 0
    %p154 = por %p152, %p153
    %p155 = scmp.le.s32.totalorder 1, %s11
    %p156 = scmp.lt.s32.totalorder %s11, 3
    %p157 = pnand %p155, %p156
    %p158 = pneg %p157
    // Predicated region
    $region9: #{impala_residual_block.1} parent=5 // pred_check
      _
    $region10: #{impala_residual_block.1} parent=5 // pred_check_branch
      %160 = sbr.rel (%p157) target = $region12
    $region11: #{impala_residual_block.1} parent=5 // pred_region
      %s161 = ssub.s32 %s11, 1
      // Predicated region
      $region13: #{impala_residual_block.1} parent=11 // pred_check
        %p162 = pneg %p58
      $region14: #{impala_residual_block.1} parent=11 // pred_check_branch
        %164 = sbr.rel (%p162) target = $region16
      $region15: #{impala_residual_block.1} parent=11 // pred_region
        _
      $region16: #{impala_residual_block.1} parent=11 // pred_fallthru
        _
      // Predicated region
      $region17: #{impala_residual_block.1} parent=11 // pred_check
        %p165 = pneg %p79
      $region18: #{impala_residual_block.1} parent=11 // pred_check_branch
        %167 = sbr.rel (%p165) target = $region20
      $region19: #{impala_residual_block.1} parent=11 // pred_region
        _
      $region20: #{impala_residual_block.1} parent=11 // pred_fallthru
        _
      // Predicated region
      $region21: #{impala_residual_block.1} parent=11 // pred_check
        %p168 = pneg %p100
      $region22: #{impala_residual_block.1} parent=11 // pred_check_branch
        %170 = sbr.rel (%p168) target = $region24
      $region23: #{impala_residual_block.1} parent=11 // pred_region
        _
      $region24: #{impala_residual_block.1} parent=11 // pred_fallthru
        _
      // Predicated region
      $region25: #{impala_residual_block.1} parent=11 // pred_check
        %p171 = pneg %p121
      $region26: #{impala_residual_block.1} parent=11 // pred_check_branch
        %173 = sbr.rel (%p171) target = $region28
      $region27: #{impala_residual_block.1} parent=11 // pred_region
        _
      $region28: #{impala_residual_block.1} parent=11 // pred_fallthru
        _
    $region12: #{impala_residual_block.1} parent=5 // pred_fallthru
      _
    %p174 = scmp.lt.s32.totalorder %s11, 2
    // Predicated region
    $region29: #{impala_residual_block.1} parent=5 // pred_check
      %p175 = pneg %p174
    $region30: #{impala_residual_block.1} parent=5 // pred_check_branch
      %177 = sbr.rel (%p175) target = $region32
    $region31: #{impala_residual_block.1} parent=5 // pred_region
      // Predicated region
      $region33: #{impala_residual_block.1} parent=31 // pred_check
        %p178 = pneg %p31
      $region34: #{impala_residual_block.1} parent=31 // pred_check_branch
        %180 = sbr.rel (%p178) target = $region36
      $region35: #{impala_residual_block.1} parent=31 // pred_region
        %p181 = scmp.lt.s32.totalorder %s11, 1
        %s182 = scalar_select %p181, %s11, 1
        %s183 = smul.addr %s182, 2
        %s184 = smul.addr %s183, 4
        %s185 = scalar_lea.vmem %s0, %s184
      $region36: #{impala_residual_block.1} parent=31 // pred_fallthru
        _
    $region32: #{impala_residual_block.1} parent=5 // pred_fallthru
      _
    %p186 = scmp.le.s32.totalorder 1, %s11
    %p187 = scmp.lt.s32.totalorder %s11, 3
    %p188 = pnand %p186, %p187
    %p189 = pneg %p188
    // Predicated region
    $region37: #{impala_residual_block.1} parent=5 // pred_check
      _
    $region38: #{impala_residual_block.1} parent=5 // pred_check_branch
      %191 = sbr.rel (%p188) target = $region40
    $region39: #{impala_residual_block.1} parent=5 // pred_region
      %s192 = ssub.s32 %s11, 1
      %p193 = scmp.lt.s32.totalorder %s16, 1
      %s194 = scalar_select %p193, %s16, 1
      %s195 = smul.addr %s194, 2
      %s196 = smul.addr %s195, 4
      %s197 = scalar_lea.vmem %s0, %s196
      %p198 = pneg %p37
      %p199 = pneg %p34
      %p200 = pneg %p58
      %p201 = pneg %p55
      %p202 = pneg %p79
      %p203 = pneg %p76
      %p204 = pneg %p100
      %p205 = pneg %p97
      %p206 = pneg %p121
      %p207 = pneg %p118
      %p208 = pneg %p147
      %p209 = pneg %p144
      %p210 = scmp.lt.s32.totalorder %s16, 1
      %s211 = scalar_select %p210, %s16, 1
      %s212 = smul.addr %s211, 2
      %s213 = smul.addr %s212, 4
      %s214 = scalar_lea.vmem %s5, %s213
      %p215 = scmp.lt.s32.totalorder %s16, 1
      %s216 = scalar_select %p215, %s16, 1
      %s217 = smul.addr %s216, 2
      %s218 = smul.addr %s217, 4
      %s219 = scalar_lea.vmem %s0, %s218
      %p220 = scmp.lt.s32.totalorder %s16, 1
      %s221 = scalar_select %p220, %s16, 1
      %s222 = smul.addr %s221, 2
      %s223 = smul.addr %s222, 4
      %s224 = scalar_lea.vmem %s5, %s223
      %v225 = vlaneseq
      %v226 = vand.u32 %v225, 127
      %v227 = vadd.s32 %v226, 128
      %vm228 = vcmp.lt.s32.totalorder %v226, 0
      %v229 = vsub.s32 0, %v226
      %v230 = vsel %vm228, %v229, %v226
      %v231 = vshrl.u32 %v230, 4
      %v232 = vand.u32 %v230, 15
      %v233 = vsub.s32 0, %v232
      %v234 = vsel %vm228, %v233, %v232
      %vm235 = vcmp.lt.s32.totalorder %v227, 0
      %v236 = vsub.s32 0, %v227
      %v237 = vsel %vm235, %v236, %v227
      %v238 = vshrl.u32 %v237, 4
      %v239 = vand.u32 %v237, 15
      %v240 = vsub.s32 0, %v239
      %v241 = vsel %vm235, %v240, %v239
      %vm242 = vcmp.ne.s32.totalorder %v234, 0
      %vm243 = vcmp.ne.s32.totalorder %v241, 0
      %vm244 = vcmp.lt.s32.totalorder %v234, 0
      %vm245 = vcmp.lt.s32.totalorder %v241, 0
      %vm246 = vmand %vm244, %vm242
      %vm247 = vmand %vm245, %vm243
      %v248 = vadd.s32 %v234, 16
      %v249 = vadd.s32 %v241, 16
      %v250 = vsel %vm246, %v248, %v234
      %v251 = vsel %vm247, %v249, %v241
      %vm252 = vcmp.ne.s32.totalorder %v250, 0
      %vm253 = vcmp.ne.s32.totalorder %v251, 0
      %vm254 = vcmp.ne.s32.totalorder %v250, 15
      %vm255 = vcmp.ne.s32.totalorder %v251, 15
      %v256 = vld [vmem:[%s2] sm:$0xf]
      %v257 = vld [vmem:[%s4] sm:$0xf]
      %v258 = vld [vmem:[%s219] sm:$0xff]
      %259 = vst [vmem:[#allocation2] sm:$0xf] 0.0
      %vm260 = vcmask 134144
      %261 = vst.msk [vmem:[#allocation2 + $0xc] sm:$0xf] %vm260, 0.0
      %v262 = vmax.f32 %v258, 0.0
      %263 = vst [vmem:[#allocation2 + $0x4] sm:$0xff] %v262
      %v264 = vld [vmem:[#allocation2] sm:$0xff]
      %v265 = vld [vmem:[#allocation2 + $0x8] sm:$0xf]
      %v266 = vld [vmem:[%s1] sm:$0xf]
      %s267 = scalar_lea.vmem %s1, 12
      %v268 = vld [vmem:[%s267] sm:$0xf]
      %v271 = vcombine.high %v264, %v264
      %272 = vrot.lane.b32.xlu0 %v264, 1
      %v273 = vpop.permute.xlu0 %272
      %274 = vrot.lane.b32.xlu0 %v271, 1
      %v275 = vpop.permute.xlu0 %274
      %276 = vrot.lane.b32.xlu0 %v265, 1
      %v277 = vpop.permute.xlu0 %276
      %vm278 = vcmask 7168
      %v279 = vsel %vm278, %v273, %v275
      %v280 = vsel %vm278, %v275, %v277
      %vm281 = vcmask 31744
      %v283 = vsel %vm281, %v268, 0
      %vm285 = vcmask 1043456
      %v286 = vsel %vm285, %v279, 0
      %v288 = vsel %vm285, %v280, 0
      %290 = vmatprep.subr.mxu0 %v288
      %291 = vmatpush1.msra.mxu0 %v286
      %292 = vmatprep.subr.mxu0 0.0
      %293 = vmatpush1.msra.mxu0 0.0
      %294 = vmatprep.subr.mxu0 0.0
      %295 = vmatpush1.msra.mxu0 0.0
      %296 = vmatprep.subr.mxu0 0.0
      %297 = vmatpush1.msra.mxu0 0.0
      %298 = vmatprep.subr.mxu0 0.0
      %299 = vmatpush1.msra.mxu0 0.0
      %300 = vmatprep.subr.mxu0 0.0
      %301 = vmatpush1.msra.mxu0 0.0
      %302 = vmatprep.subr.mxu0 0.0
      %303 = vmatpush1.msra.mxu0 0.0
      %304 = vmatprep.subr.mxu0 0.0
      %305 = vmatpush1.msra.mxu0 0.0
      %306 = vmatprep.subr.mxu0 0.0
      %307 = vmatpush1.msra.mxu0 0.0
      %308 = vmatprep.subr.mxu0 0.0
      %309 = vmatpush1.msra.mxu0 0.0
      %310 = vmatprep.subr.mxu0 0.0
      %311 = vmatpush1.msra.mxu0 0.0
      %312 = vmatprep.subr.mxu0 0.0
      %313 = vmatpush1.msra.mxu0 0.0
      %314 = vmatprep.subr.mxu0 0.0
      %315 = vmatpush1.msra.mxu0 0.0
      %316 = vmatprep.subr.mxu0 0.0
      %317 = vmatpush1.msra.mxu0 0.0
      %318 = vmatprep.subr.mxu0 0.0
      %319 = vmatpush1.msra.mxu0 0.0
      %320 = vmatprep.subr.mxu0 0.0
      %321 = vmatpush1.msra.mxu0 0.0
      %322 = vmatprep.subr.mxu0 0.0
      %323 = vmatpush1.msra.mxu0 0.0
      %324 = vmatprep.subr.mxu0 0.0
      %325 = vmatpush1.msra.mxu0 0.0
      %326 = vmatprep.subr.mxu0 0.0
      %327 = vmatpush1.msra.mxu0 0.0
      %328 = vmatprep.subr.mxu0 0.0
      %329 = vmatpush1.msra.mxu0 0.0
      %330 = vmatprep.subr.mxu0 0.0
      %331 = vmatpush1.msra.mxu0 0.0
      %332 = vmatprep.subr.mxu0 0.0
      %333 = vmatpush1.msra.mxu0 0.0
      %334 = vmatprep.subr.mxu0 0.0
      %335 = vmatpush1.msra.mxu0 0.0
      %336 = vmatprep.subr.mxu0 0.0
      %337 = vmatpush1.msra.mxu0 0.0
      %338 = vmatprep.subr.mxu0 0.0
      %339 = vmatpush1.msra.mxu0 0.0
      %340 = vmatprep.subr.mxu0 0.0
      %341 = vmatpush1.msra.mxu0 0.0
      %342 = vmatprep.subr.mxu0 0.0
      %343 = vmatpush1.msra.mxu0 0.0
      %344 = vmatprep.subr.mxu0 0.0
      %345 = vmatpush1.msra.mxu0 0.0
      %346 = vmatprep.subr.mxu0 0.0
      %347 = vmatpush1.msra.mxu0 0.0
      %348 = vmatprep.subr.mxu0 0.0
      %349 = vmatpush1.msra.mxu0 0.0
      %350 = vmatprep.subr.mxu0 0.0
      %351 = vmatpush1.msra.mxu0 0.0
      %352 = vmatprep.subr.mxu0 0.0
      %353 = vmatpush1.msra.mxu0 0.0
      %354 = vmatprep.mubr.f32.mxu0 0.0
      %355 = vmatmul.mubr.f32.gmra.mrb[0].mxu0 %v283
      %v356 = vpop.f32.mrb[0].mxu0
      %v357 = vadd.f32 0.0, %v356
      %v358 = vpop.f32.mrb[0].mxu0
      %v359 = vadd.f32 0.0, %v358
      %360 = vdwg.mxu0
      %361 = vrot.lane.b32.xlu0 %v264, 17
      %v362 = vpop.permute.xlu0 %361
      %363 = vrot.lane.b32.xlu0 %v271, 17
      %v364 = vpop.permute.xlu0 %363
      %365 = vrot.lane.b32.xlu0 %v265, 17
      %v366 = vpop.permute.xlu0 %365
      %vm367 = vcmask 138240
      %v368 = vsel %vm367, %v362, %v364
      %v369 = vsel %vm367, %v364, %v366
      %v371 = vsel %vm281, %v266, 0
      %v373 = vsel %vm285, %v368, 0
      %v375 = vsel %vm285, %v369, 0
      %377 = vmatprep.subr.mxu0 %v375
      %378 = vmatpush1.msra.mxu0 %v373
      %379 = vmatprep.subr.mxu0 0.0
      %380 = vmatpush1.msra.mxu0 0.0
      %381 = vmatprep.subr.mxu0 0.0
      %382 = vmatpush1.msra.mxu0 0.0
      %383 = vmatprep.subr.mxu0 0.0
      %384 = vmatpush1.msra.mxu0 0.0
      %385 = vmatprep.subr.mxu0 0.0
      %386 = vmatpush1.msra.mxu0 0.0
      %387 = vmatprep.subr.mxu0 0.0
      %388 = vmatpush1.msra.mxu0 0.0
      %389 = vmatprep.subr.mxu0 0.0
      %390 = vmatpush1.msra.mxu0 0.0
      %391 = vmatprep.subr.mxu0 0.0
      %392 = vmatpush1.msra.mxu0 0.0
      %393 = vmatprep.subr.mxu0 0.0
      %394 = vmatpush1.msra.mxu0 0.0
      %395 = vmatprep.subr.mxu0 0.0
      %396 = vmatpush1.msra.mxu0 0.0
      %397 = vmatprep.subr.mxu0 0.0
      %398 = vmatpush1.msra.mxu0 0.0
      %399 = vmatprep.subr.mxu0 0.0
      %400 = vmatpush1.msra.mxu0 0.0
      %401 = vmatprep.subr.mxu0 0.0
      %402 = vmatpush1.msra.mxu0 0.0
      %403 = vmatprep.subr.mxu0 0.0
      %404 = vmatpush1.msra.mxu0 0.0
      %405 = vmatprep.subr.mxu0 0.0
      %406 = vmatpush1.msra.mxu0 0.0
      %407 = vmatprep.subr.mxu0 0.0
      %408 = vmatpush1.msra.mxu0 0.0
      %409 = vmatprep.subr.mxu0 0.0
      %410 = vmatpush1.msra.mxu0 0.0
      %411 = vmatprep.subr.mxu0 0.0
      %412 = vmatpush1.msra.mxu0 0.0
      %413 = vmatprep.subr.mxu0 0.0
      %414 = vmatpush1.msra.mxu0 0.0
      %415 = vmatprep.subr.mxu0 0.0
      %416 = vmatpush1.msra.mxu0 0.0
      %417 = vmatprep.subr.mxu0 0.0
      %418 = vmatpush1.msra.mxu0 0.0
      %419 = vmatprep.subr.mxu0 0.0
      %420 = vmatpush1.msra.mxu0 0.0
      %421 = vmatprep.subr.mxu0 0.0
      %422 = vmatpush1.msra.mxu0 0.0
      %423 = vmatprep.subr.mxu0 0.0
      %424 = vmatpush1.msra.mxu0 0.0
      %425 = vmatprep.subr.mxu0 0.0
      %426 = vmatpush1.msra.mxu0 0.0
      %427 = vmatprep.subr.mxu0 0.0
      %428 = vmatpush1.msra.mxu0 0.0
      %429 = vmatprep.subr.mxu0 0.0
      %430 = vmatpush1.msra.mxu0 0.0
      %431 = vmatprep.subr.mxu0 0.0
      %432 = vmatpush1.msra.mxu0 0.0
      %433 = vmatprep.subr.mxu0 0.0
      %434 = vmatpush1.msra.mxu0 0.0
      %435 = vmatprep.subr.mxu0 0.0
      %436 = vmatpush1.msra.mxu0 0.0
      %437 = vmatprep.subr.mxu0 0.0
      %438 = vmatpush1.msra.mxu0 0.0
      %439 = vmatprep.subr.mxu0 0.0
      %440 = vmatpush1.msra.mxu0 0.0
      %441 = vmatprep.mubr.f32.mxu0 0.0
      %442 = vmatmul.mubr.f32.gmra.mrb[0].mxu0 %v371
      %v443 = vpop.f32.mrb[0].mxu0
      %v444 = vadd.f32 %v357, %v443
      %v445 = vpop.f32.mrb[0].mxu0
      %v446 = vadd.f32 %v359, %v445
      %447 = vdwg.mxu0
      %v448 = vld [vmem:[#allocation2 + $0x4] sm:$0xff]
      %v449 = vld [vmem:[#allocation2 + $0xc] sm:$0xf]
      %s450 = scalar_lea.vmem %s1, 24
      %v451 = vld [vmem:[%s450] sm:$0xf]
      %v454 = vcombine.high %v448, %v448
      %455 = vrot.lane.b32.xlu0 %v448, 113
      %v456 = vpop.permute.xlu0 %455
      %457 = vrot.lane.b32.xlu0 %v454, 113
      %v458 = vpop.permute.xlu0 %457
      %459 = vrot.lane.b32.xlu0 %v449, 113
      %v460 = vpop.permute.xlu0 %459
      %vm461 = vcmask 924672
      %v462 = vsel %vm461, %v456, %v458
      %v463 = vsel %vm461, %v458, %v460
      %v465 = vsel %vm281, %v451, 0
      %v467 = vsel %vm285, %v462, 0
      %v469 = vsel %vm285, %v463, 0
      %471 = vmatprep.subr.mxu0 %v469
      %472 = vmatpush1.msra.mxu0 %v467
      %473 = vmatprep.subr.mxu0 0.0
      %474 = vmatpush1.msra.mxu0 0.0
      %475 = vmatprep.subr.mxu0 0.0
      %476 = vmatpush1.msra.mxu0 0.0
      %477 = vmatprep.subr.mxu0 0.0
      %478 = vmatpush1.msra.mxu0 0.0
      %479 = vmatprep.subr.mxu0 0.0
      %480 = vmatpush1.msra.mxu0 0.0
      %481 = vmatprep.subr.mxu0 0.0
      %482 = vmatpush1.msra.mxu0 0.0
      %483 = vmatprep.subr.mxu0 0.0
      %484 = vmatpush1.msra.mxu0 0.0
      %485 = vmatprep.subr.mxu0 0.0
      %486 = vmatpush1.msra.mxu0 0.0
      %487 = vmatprep.subr.mxu0 0.0
      %488 = vmatpush1.msra.mxu0 0.0
      %489 = vmatprep.subr.mxu0 0.0
      %490 = vmatpush1.msra.mxu0 0.0
      %491 = vmatprep.subr.mxu0 0.0
      %492 = vmatpush1.msra.mxu0 0.0
      %493 = vmatprep.subr.mxu0 0.0
      %494 = vmatpush1.msra.mxu0 0.0
      %495 = vmatprep.subr.mxu0 0.0
      %496 = vmatpush1.msra.mxu0 0.0
      %497 = vmatprep.subr.mxu0 0.0
      %498 = vmatpush1.msra.mxu0 0.0
      %499 = vmatprep.subr.mxu0 0.0
      %500 = vmatpush1.msra.mxu0 0.0
      %501 = vmatprep.subr.mxu0 0.0
      %502 = vmatpush1.msra.mxu0 0.0
      %503 = vmatprep.subr.mxu0 0.0
      %504 = vmatpush1.msra.mxu0 0.0
      %505 = vmatprep.subr.mxu0 0.0
      %506 = vmatpush1.msra.mxu0 0.0
      %507 = vmatprep.subr.mxu0 0.0
      %508 = vmatpush1.msra.mxu0 0.0
      %509 = vmatprep.subr.mxu0 0.0
      %510 = vmatpush1.msra.mxu0 0.0
      %511 = vmatprep.subr.mxu0 0.0
      %512 = vmatpush1.msra.mxu0 0.0
      %513 = vmatprep.subr.mxu0 0.0
      %514 = vmatpush1.msra.mxu0 0.0
      %515 = vmatprep.subr.mxu0 0.0
      %516 = vmatpush1.msra.mxu0 0.0
      %517 = vmatprep.subr.mxu0 0.0
      %518 = vmatpush1.msra.mxu0 0.0
      %519 = vmatprep.subr.mxu0 0.0
      %520 = vmatpush1.msra.mxu0 0.0
      %521 = vmatprep.subr.mxu0 0.0
      %522 = vmatpush1.msra.mxu0 0.0
      %523 = vmatprep.subr.mxu0 0.0
      %524 = vmatpush1.msra.mxu0 0.0
      %525 = vmatprep.subr.mxu0 0.0
      %526 = vmatpush1.msra.mxu0 0.0
      %527 = vmatprep.subr.mxu0 0.0
      %528 = vmatpush1.msra.mxu0 0.0
      %529 = vmatprep.subr.mxu0 0.0
      %530 = vmatpush1.msra.mxu0 0.0
      %531 = vmatprep.subr.mxu0 0.0
      %532 = vmatpush1.msra.mxu0 0.0
      %533 = vmatprep.subr.mxu0 0.0
      %534 = vmatpush1.msra.mxu0 0.0
      %535 = vmatprep.mubr.f32.mxu0 0.0
      %536 = vmatmul.mubr.f32.gmra.mrb[0].mxu0 %v465
      %v537 = vpop.f32.mrb[0].mxu0
      %v538 = vadd.f32 0.0, %v537
      %v539 = vpop.f32.mrb[0].mxu0
      %v540 = vadd.f32 0.0, %v539
      %541 = vdwg.mxu0
      %v542 = vadd.f32 %v444, %v538
      %v543 = vadd.f32 %v446, %v540
      %v544 = vsel %vm252, 1, 0
      %v545 = vsel %vm253, 1, 0
      %vm546 = vcmp.eq.s32.totalorder %v544, 1
      %vm547 = vcmp.eq.s32.totalorder %v545, 1
      %v548 = vsel %vm546, %v542, 0.0
      %v549 = vsel %vm547, %v543, 0.0
      %v550 = vadd.f32 %v548, 0.0
      %v551 = vadd.f32 %v549, 0.0
      %v552 = vld [vmem:[#allocation2] sm:$0xff]
      %v553 = vld [vmem:[#allocation2 + $0x8] sm:$0xf]
      %s554 = scalar_lea.vmem %s1, 4
      %v555 = vld [vmem:[%s554] sm:$0xf]
      %v556 = vld [vmem:[#allocation2 + $0x4] sm:$0xff]
      %s557 = scalar_lea.vmem %s1, 16
      %v558 = vld [vmem:[%s557] sm:$0xf]
      %v560 = vcombine.high %v556, %v556
      %v562 = vsel %vm281, %v558, 0
      %v564 = vsel %vm285, %v556, 0
      %v566 = vsel %vm285, %v560, 0
      %568 = vmatprep.subr.mxu0 %v566
      %569 = vmatpush1.msra.mxu0 %v564
      %570 = vmatprep.subr.mxu0 0.0
      %571 = vmatpush1.msra.mxu0 0.0
      %572 = vmatprep.subr.mxu0 0.0
      %573 = vmatpush1.msra.mxu0 0.0
      %574 = vmatprep.subr.mxu0 0.0
      %575 = vmatpush1.msra.mxu0 0.0
      %576 = vmatprep.subr.mxu0 0.0
      %577 = vmatpush1.msra.mxu0 0.0
      %578 = vmatprep.subr.mxu0 0.0
      %579 = vmatpush1.msra.mxu0 0.0
      %580 = vmatprep.subr.mxu0 0.0
      %581 = vmatpush1.msra.mxu0 0.0
      %582 = vmatprep.subr.mxu0 0.0
      %583 = vmatpush1.msra.mxu0 0.0
      %584 = vmatprep.subr.mxu0 0.0
      %585 = vmatpush1.msra.mxu0 0.0
      %586 = vmatprep.subr.mxu0 0.0
      %587 = vmatpush1.msra.mxu0 0.0
      %588 = vmatprep.subr.mxu0 0.0
      %589 = vmatpush1.msra.mxu0 0.0
      %590 = vmatprep.subr.mxu0 0.0
      %591 = vmatpush1.msra.mxu0 0.0
      %592 = vmatprep.subr.mxu0 0.0
      %593 = vmatpush1.msra.mxu0 0.0
      %594 = vmatprep.subr.mxu0 0.0
      %595 = vmatpush1.msra.mxu0 0.0
      %596 = vmatprep.subr.mxu0 0.0
      %597 = vmatpush1.msra.mxu0 0.0
      %598 = vmatprep.subr.mxu0 0.0
      %599 = vmatpush1.msra.mxu0 0.0
      %600 = vmatprep.subr.mxu0 0.0
      %601 = vmatpush1.msra.mxu0 0.0
      %602 = vmatprep.subr.mxu0 0.0
      %603 = vmatpush1.msra.mxu0 0.0
      %604 = vmatprep.subr.mxu0 0.0
      %605 = vmatpush1.msra.mxu0 0.0
      %606 = vmatprep.subr.mxu0 0.0
      %607 = vmatpush1.msra.mxu0 0.0
      %608 = vmatprep.subr.mxu0 0.0
      %609 = vmatpush1.msra.mxu0 0.0
      %610 = vmatprep.subr.mxu0 0.0
      %611 = vmatpush1.msra.mxu0 0.0
      %612 = vmatprep.subr.mxu0 0.0
      %613 = vmatpush1.msra.mxu0 0.0
      %614 = vmatprep.subr.mxu0 0.0
      %615 = vmatpush1.msra.mxu0 0.0
      %616 = vmatprep.subr.mxu0 0.0
      %617 = vmatpush1.msra.mxu0 0.0
      %618 = vmatprep.subr.mxu0 0.0
      %619 = vmatpush1.msra.mxu0 0.0
      %620 = vmatprep.subr.mxu0 0.0
      %621 = vmatpush1.msra.mxu0 0.0
      %622 = vmatprep.subr.mxu0 0.0
      %623 = vmatpush1.msra.mxu0 0.0
      %624 = vmatprep.subr.mxu0 0.0
      %625 = vmatpush1.msra.mxu0 0.0
      %626 = vmatprep.subr.mxu0 0.0
      %627 = vmatpush1.msra.mxu0 0.0
      %628 = vmatprep.subr.mxu0 0.0
      %629 = vmatpush1.msra.mxu0 0.0
      %630 = vmatprep.subr.mxu0 0.0
      %631 = vmatpush1.msra.mxu0 0.0
      %632 = vmatprep.mubr.f32.mxu0 0.0
      %633 = vmatmul.mubr.f32.gmra.mrb[0].mxu0 %v562
      %v634 = vpop.f32.mrb[0].mxu0
      %v635 = vadd.f32 0.0, %v634
      %v636 = vpop.f32.mrb[0].mxu0
      %v637 = vadd.f32 0.0, %v636
      %638 = vdwg.mxu0
      %v641 = vcombine.high %v552, %v552
      %642 = vrot.lane.b32.xlu0 %v552, 16
      %v643 = vpop.permute.xlu0 %642
      %644 = vrot.lane.b32.xlu0 %v641, 16
      %v645 = vpop.permute.xlu0 %644
      %646 = vrot.lane.b32.xlu0 %v553, 16
      %v647 = vpop.permute.xlu0 %646
      %vm648 = vcmask 130048
      %v649 = vsel %vm648, %v643, %v645
      %v650 = vsel %vm648, %v645, %v647
      %v652 = vsel %vm281, %v555, 0
      %v654 = vsel %vm285, %v649, 0
      %v656 = vsel %vm285, %v650, 0
      %658 = vmatprep.subr.mxu0 %v656
      %659 = vmatpush1.msra.mxu0 %v654
      %660 = vmatprep.subr.mxu0 0.0
      %661 = vmatpush1.msra.mxu0 0.0
      %662 = vmatprep.subr.mxu0 0.0
      %663 = vmatpush1.msra.mxu0 0.0
      %664 = vmatprep.subr.mxu0 0.0
      %665 = vmatpush1.msra.mxu0 0.0
      %666 = vmatprep.subr.mxu0 0.0
      %667 = vmatpush1.msra.mxu0 0.0
      %668 = vmatprep.subr.mxu0 0.0
      %669 = vmatpush1.msra.mxu0 0.0
      %670 = vmatprep.subr.mxu0 0.0
      %671 = vmatpush1.msra.mxu0 0.0
      %672 = vmatprep.subr.mxu0 0.0
      %673 = vmatpush1.msra.mxu0 0.0
      %674 = vmatprep.subr.mxu0 0.0
      %675 = vmatpush1.msra.mxu0 0.0
      %676 = vmatprep.subr.mxu0 0.0
      %677 = vmatpush1.msra.mxu0 0.0
      %678 = vmatprep.subr.mxu0 0.0
      %679 = vmatpush1.msra.mxu0 0.0
      %680 = vmatprep.subr.mxu0 0.0
      %681 = vmatpush1.msra.mxu0 0.0
      %682 = vmatprep.subr.mxu0 0.0
      %683 = vmatpush1.msra.mxu0 0.0
      %684 = vmatprep.subr.mxu0 0.0
      %685 = vmatpush1.msra.mxu0 0.0
      %686 = vmatprep.subr.mxu0 0.0
      %687 = vmatpush1.msra.mxu0 0.0
      %688 = vmatprep.subr.mxu0 0.0
      %689 = vmatpush1.msra.mxu0 0.0
      %690 = vmatprep.subr.mxu0 0.0
      %691 = vmatpush1.msra.mxu0 0.0
      %692 = vmatprep.subr.mxu0 0.0
      %693 = vmatpush1.msra.mxu0 0.0
      %694 = vmatprep.subr.mxu0 0.0
      %695 = vmatpush1.msra.mxu0 0.0
      %696 = vmatprep.subr.mxu0 0.0
      %697 = vmatpush1.msra.mxu0 0.0
      %698 = vmatprep.subr.mxu0 0.0
      %699 = vmatpush1.msra.mxu0 0.0
      %700 = vmatprep.subr.mxu0 0.0
      %701 = vmatpush1.msra.mxu0 0.0
      %702 = vmatprep.subr.mxu0 0.0
      %703 = vmatpush1.msra.mxu0 0.0
      %704 = vmatprep.subr.mxu0 0.0
      %705 = vmatpush1.msra.mxu0 0.0
      %706 = vmatprep.subr.mxu0 0.0
      %707 = vmatpush1.msra.mxu0 0.0
      %708 = vmatprep.subr.mxu0 0.0
      %709 = vmatpush1.msra.mxu0 0.0
      %710 = vmatprep.subr.mxu0 0.0
      %711 = vmatpush1.msra.mxu0 0.0
      %712 = vmatprep.subr.mxu0 0.0
      %713 = vmatpush1.msra.mxu0 0.0
      %714 = vmatprep.subr.mxu0 0.0
      %715 = vmatpush1.msra.mxu0 0.0
      %716 = vmatprep.subr.mxu0 0.0
      %717 = vmatpush1.msra.mxu0 0.0
      %718 = vmatprep.subr.mxu0 0.0
      %719 = vmatpush1.msra.mxu0 0.0
      %720 = vmatprep.subr.mxu0 0.0
      %721 = vmatpush1.msra.mxu0 0.0
      %722 = vmatprep.mubr.f32.mxu0 0.0
      %723 = vmatmul.mubr.f32.gmra.mrb[0].mxu0 %v652
      %v724 = vpop.f32.mrb[0].mxu0
      %v725 = vadd.f32 %v635, %v724
      %v726 = vpop.f32.mrb[0].mxu0
      %v727 = vadd.f32 %v637, %v726
      %728 = vdwg.mxu0
      %v729 = vld [vmem:[#allocation2 + $0x4] sm:$0xff]
      %v730 = vld [vmem:[#allocation2 + $0xc] sm:$0xf]
      %s731 = scalar_lea.vmem %s1, 28
      %v732 = vld [vmem:[%s731] sm:$0xf]
      %v735 = vcombine.high %v729, %v729
      %736 = vrot.lane.b32.xlu0 %v729, 112
      %v737 = vpop.permute.xlu0 %736
      %738 = vrot.lane.b32.xlu0 %v735, 112
      %v739 = vpop.permute.xlu0 %738
      %740 = vrot.lane.b32.xlu0 %v730, 112
      %v741 = vpop.permute.xlu0 %740
      %vm742 = vcmask 916480
      %v743 = vsel %vm742, %v737, %v739
      %v744 = vsel %vm742, %v739, %v741
      %v746 = vsel %vm281, %v732, 0
      %v748 = vsel %vm285, %v743, 0
      %v750 = vsel %vm285, %v744, 0
      %752 = vmatprep.subr.mxu0 %v750
      %753 = vmatpush1.msra.mxu0 %v748
      %754 = vmatprep.subr.mxu0 0.0
      %755 = vmatpush1.msra.mxu0 0.0
      %756 = vmatprep.subr.mxu0 0.0
      %757 = vmatpush1.msra.mxu0 0.0
      %758 = vmatprep.subr.mxu0 0.0
      %759 = vmatpush1.msra.mxu0 0.0
      %760 = vmatprep.subr.mxu0 0.0
      %761 = vmatpush1.msra.mxu0 0.0
      %762 = vmatprep.subr.mxu0 0.0
      %763 = vmatpush1.msra.mxu0 0.0
      %764 = vmatprep.subr.mxu0 0.0
      %765 = vmatpush1.msra.mxu0 0.0
      %766 = vmatprep.subr.mxu0 0.0
      %767 = vmatpush1.msra.mxu0 0.0
      %768 = vmatprep.subr.mxu0 0.0
      %769 = vmatpush1.msra.mxu0 0.0
      %770 = vmatprep.subr.mxu0 0.0
      %771 = vmatpush1.msra.mxu0 0.0
      %772 = vmatprep.subr.mxu0 0.0
      %773 = vmatpush1.msra.mxu0 0.0
      %774 = vmatprep.subr.mxu0 0.0
      %775 = vmatpush1.msra.mxu0 0.0
      %776 = vmatprep.subr.mxu0 0.0
      %777 = vmatpush1.msra.mxu0 0.0
      %778 = vmatprep.subr.mxu0 0.0
      %779 = vmatpush1.msra.mxu0 0.0
      %780 = vmatprep.subr.mxu0 0.0
      %781 = vmatpush1.msra.mxu0 0.0
      %782 = vmatprep.subr.mxu0 0.0
      %783 = vmatpush1.msra.mxu0 0.0
      %784 = vmatprep.subr.mxu0 0.0
      %785 = vmatpush1.msra.mxu0 0.0
      %786 = vmatprep.subr.mxu0 0.0
      %787 = vmatpush1.msra.mxu0 0.0
      %788 = vmatprep.subr.mxu0 0.0
      %789 = vmatpush1.msra.mxu0 0.0
      %790 = vmatprep.subr.mxu0 0.0
      %791 = vmatpush1.msra.mxu0 0.0
      %792 = vmatprep.subr.mxu0 0.0
      %793 = vmatpush1.msra.mxu0 0.0
      %794 = vmatprep.subr.mxu0 0.0
      %795 = vmatpush1.msra.mxu0 0.0
      %796 = vmatprep.subr.mxu0 0.0
      %797 = vmatpush1.msra.mxu0 0.0
      %798 = vmatprep.subr.mxu0 0.0
      %799 = vmatpush1.msra.mxu0 0.0
      %800 = vmatprep.subr.mxu0 0.0
      %801 = vmatpush1.msra.mxu0 0.0
      %802 = vmatprep.subr.mxu0 0.0
      %803 = vmatpush1.msra.mxu0 0.0
      %804 = vmatprep.subr.mxu0 0.0
      %805 = vmatpush1.msra.mxu0 0.0
      %806 = vmatprep.subr.mxu0 0.0
      %807 = vmatpush1.msra.mxu0 0.0
      %808 = vmatprep.subr.mxu0 0.0
      %809 = vmatpush1.msra.mxu0 0.0
      %810 = vmatprep.subr.mxu0 0.0
      %811 = vmatpush1.msra.mxu0 0.0
      %812 = vmatprep.subr.mxu0 0.0
      %813 = vmatpush1.msra.mxu0 0.0
      %814 = vmatprep.subr.mxu0 0.0
      %815 = vmatpush1.msra.mxu0 0.0
      %816 = vmatprep.mubr.f32.mxu0 0.0
      %817 = vmatmul.mubr.f32.gmra.mrb[0].mxu0 %v746
      %v818 = vpop.f32.mrb[0].mxu0
      %v819 = vadd.f32 0.0, %v818
      %v820 = vpop.f32.mrb[0].mxu0
      %v821 = vadd.f32 0.0, %v820
      %822 = vdwg.mxu0
      %v823 = vadd.f32 %v725, %v819
      %v824 = vadd.f32 %v727, %v821
      %v825 = vadd.f32 %v550, %v823
      %v826 = vadd.f32 %v551, %v824
      %v827 = vld [vmem:[#allocation2] sm:$0xff]
      %v828 = vld [vmem:[#allocation2 + $0x8] sm:$0xf]
      %s829 = scalar_lea.vmem %s1, 8
      %v830 = vld [vmem:[%s829] sm:$0xf]
      %v831 = vld [vmem:[#allocation2 + $0x4] sm:$0xff]
      %v832 = vld [vmem:[#allocation2 + $0xc] sm:$0xf]
      %s833 = scalar_lea.vmem %s1, 20
      %v834 = vld [vmem:[%s833] sm:$0xf]
      %v837 = vcombine.high %v831, %v831
      %838 = vrot.lane.b32.xlu0 %v831, 127
      %v839 = vpop.permute.xlu0 %838
      %840 = vrot.lane.b32.xlu0 %v837, 127
      %v841 = vpop.permute.xlu0 %840
      %842 = vrot.lane.b32.xlu0 %v832, 127
      %v843 = vpop.permute.xlu0 %842
      %vm844 = vcmask 1039360
      %v845 = vsel %vm844, %v839, %v841
      %v846 = vsel %vm844, %v841, %v843
      %v848 = vsel %vm281, %v834, 0
      %v850 = vsel %vm285, %v845, 0
      %v852 = vsel %vm285, %v846, 0
      %854 = vmatprep.subr.mxu0 %v852
      %855 = vmatpush1.msra.mxu0 %v850
      %856 = vmatprep.subr.mxu0 0.0
      %857 = vmatpush1.msra.mxu0 0.0
      %858 = vmatprep.subr.mxu0 0.0
      %859 = vmatpush1.msra.mxu0 0.0
      %860 = vmatprep.subr.mxu0 0.0
      %861 = vmatpush1.msra.mxu0 0.0
      %862 = vmatprep.subr.mxu0 0.0
      %863 = vmatpush1.msra.mxu0 0.0
      %864 = vmatprep.subr.mxu0 0.0
      %865 = vmatpush1.msra.mxu0 0.0
      %866 = vmatprep.subr.mxu0 0.0
      %867 = vmatpush1.msra.mxu0 0.0
      %868 = vmatprep.subr.mxu0 0.0
      %869 = vmatpush1.msra.mxu0 0.0
      %870 = vmatprep.subr.mxu0 0.0
      %871 = vmatpush1.msra.mxu0 0.0
      %872 = vmatprep.subr.mxu0 0.0
      %873 = vmatpush1.msra.mxu0 0.0
      %874 = vmatprep.subr.mxu0 0.0
      %875 = vmatpush1.msra.mxu0 0.0
      %876 = vmatprep.subr.mxu0 0.0
      %877 = vmatpush1.msra.mxu0 0.0
      %878 = vmatprep.subr.mxu0 0.0
      %879 = vmatpush1.msra.mxu0 0.0
      %880 = vmatprep.subr.mxu0 0.0
      %881 = vmatpush1.msra.mxu0 0.0
      %882 = vmatprep.subr.mxu0 0.0
      %883 = vmatpush1.msra.mxu0 0.0
      %884 = vmatprep.subr.mxu0 0.0
      %885 = vmatpush1.msra.mxu0 0.0
      %886 = vmatprep.subr.mxu0 0.0
      %887 = vmatpush1.msra.mxu0 0.0
      %888 = vmatprep.subr.mxu0 0.0
      %889 = vmatpush1.msra.mxu0 0.0
      %890 = vmatprep.subr.mxu0 0.0
      %891 = vmatpush1.msra.mxu0 0.0
      %892 = vmatprep.subr.mxu0 0.0
      %893 = vmatpush1.msra.mxu0 0.0
      %894 = vmatprep.subr.mxu0 0.0
      %895 = vmatpush1.msra.mxu0 0.0
      %896 = vmatprep.subr.mxu0 0.0
      %897 = vmatpush1.msra.mxu0 0.0
      %898 = vmatprep.subr.mxu0 0.0
      %899 = vmatpush1.msra.mxu0 0.0
      %900 = vmatprep.subr.mxu0 0.0
      %901 = vmatpush1.msra.mxu0 0.0
      %902 = vmatprep.subr.mxu0 0.0
      %903 = vmatpush1.msra.mxu0 0.0
      %904 = vmatprep.subr.mxu0 0.0
      %905 = vmatpush1.msra.mxu0 0.0
      %906 = vmatprep.subr.mxu0 0.0
      %907 = vmatpush1.msra.mxu0 0.0
      %908 = vmatprep.subr.mxu0 0.0
      %909 = vmatpush1.msra.mxu0 0.0
      %910 = vmatprep.subr.mxu0 0.0
      %911 = vmatpush1.msra.mxu0 0.0
      %912 = vmatprep.subr.mxu0 0.0
      %913 = vmatpush1.msra.mxu0 0.0
      %914 = vmatprep.subr.mxu0 0.0
      %915 = vmatpush1.msra.mxu0 0.0
      %916 = vmatprep.subr.mxu0 0.0
      %917 = vmatpush1.msra.mxu0 0.0
      %918 = vmatprep.mubr.f32.mxu0 0.0
      %919 = vmatmul.mubr.f32.gmra.mrb[0].mxu0 %v848
      %v920 = vpop.f32.mrb[0].mxu0
      %v921 = vadd.f32 0.0, %v920
      %v922 = vpop.f32.mrb[0].mxu0
      %v923 = vadd.f32 0.0, %v922
      %924 = vdwg.mxu0
      %v927 = vcombine.high %v827, %v827
      %928 = vrot.lane.b32.xlu0 %v827, 15
      %v929 = vpop.permute.xlu0 %928
      %930 = vrot.lane.b32.xlu0 %v927, 15
      %v931 = vpop.permute.xlu0 %930
      %932 = vrot.lane.b32.xlu0 %v828, 15
      %v933 = vpop.permute.xlu0 %932
      %vm934 = vcmask 121856
      %v935 = vsel %vm934, %v929, %v931
      %v936 = vsel %vm934, %v931, %v933
      %v938 = vsel %vm281, %v830, 0
      %v940 = vsel %vm285, %v935, 0
      %v942 = vsel %vm285, %v936, 0
      %944 = vmatprep.subr.mxu0 %v942
      %945 = vmatpush1.msra.mxu0 %v940
      %946 = vmatprep.subr.mxu0 0.0
      %947 = vmatpush1.msra.mxu0 0.0
      %948 = vmatprep.subr.mxu0 0.0
      %949 = vmatpush1.msra.mxu0 0.0
      %950 = vmatprep.subr.mxu0 0.0
      %951 = vmatpush1.msra.mxu0 0.0
      %952 = vmatprep.subr.mxu0 0.0
      %953 = vmatpush1.msra.mxu0 0.0
      %954 = vmatprep.subr.mxu0 0.0
      %955 = vmatpush1.msra.mxu0 0.0
      %956 = vmatprep.subr.mxu0 0.0
      %957 = vmatpush1.msra.mxu0 0.0
      %958 = vmatprep.subr.mxu0 0.0
      %959 = vmatpush1.msra.mxu0 0.0
      %960 = vmatprep.subr.mxu0 0.0
      %961 = vmatpush1.msra.mxu0 0.0
      %962 = vmatprep.subr.mxu0 0.0
      %963 = vmatpush1.msra.mxu0 0.0
      %964 = vmatprep.subr.mxu0 0.0
      %965 = vmatpush1.msra.mxu0 0.0
      %966 = vmatprep.subr.mxu0 0.0
      %967 = vmatpush1.msra.mxu0 0.0
      %968 = vmatprep.subr.mxu0 0.0
      %969 = vmatpush1.msra.mxu0 0.0
      %970 = vmatprep.subr.mxu0 0.0
      %971 = vmatpush1.msra.mxu0 0.0
      %972 = vmatprep.subr.mxu0 0.0
      %973 = vmatpush1.msra.mxu0 0.0
      %974 = vmatprep.subr.mxu0 0.0
      %975 = vmatpush1.msra.mxu0 0.0
      %976 = vmatprep.subr.mxu0 0.0
      %977 = vmatpush1.msra.mxu0 0.0
      %978 = vmatprep.subr.mxu0 0.0
      %979 = vmatpush1.msra.mxu0 0.0
      %980 = vmatprep.subr.mxu0 0.0
      %981 = vmatpush1.msra.mxu0 0.0
      %982 = vmatprep.subr.mxu0 0.0
      %983 = vmatpush1.msra.mxu0 0.0
      %984 = vmatprep.subr.mxu0 0.0
      %985 = vmatpush1.msra.mxu0 0.0
      %986 = vmatprep.subr.mxu0 0.0
      %987 = vmatpush1.msra.mxu0 0.0
      %988 = vmatprep.subr.mxu0 0.0
      %989 = vmatpush1.msra.mxu0 0.0
      %990 = vmatprep.subr.mxu0 0.0
      %991 = vmatpush1.msra.mxu0 0.0
      %992 = vmatprep.subr.mxu0 0.0
      %993 = vmatpush1.msra.mxu0 0.0
      %994 = vmatprep.subr.mxu0 0.0
      %995 = vmatpush1.msra.mxu0 0.0
      %996 = vmatprep.subr.mxu0 0.0
      %997 = vmatpush1.msra.mxu0 0.0
      %998 = vmatprep.subr.mxu0 0.0
      %999 = vmatpush1.msra.mxu0 0.0
      %1000 = vmatprep.subr.mxu0 0.0
      %1001 = vmatpush1.msra.mxu0 0.0
      %1002 = vmatprep.subr.mxu0 0.0
      %1003 = vmatpush1.msra.mxu0 0.0
      %1004 = vmatprep.subr.mxu0 0.0
      %1005 = vmatpush1.msra.mxu0 0.0
      %1006 = vmatprep.subr.mxu0 0.0
      %1007 = vmatpush1.msra.mxu0 0.0
      %1008 = vmatprep.mubr.f32.mxu0 0.0
      %1009 = vmatmul.mubr.f32.gmra.mrb[0].mxu0 %v938
      %v1010 = vpop.f32.mrb[0].mxu0
      %v1011 = vadd.f32 %v921, %v1010
      %v1012 = vpop.f32.mrb[0].mxu0
      %v1013 = vadd.f32 %v923, %v1012
      %1014 = vdwg.mxu0
      %v1015 = vld [vmem:[#allocation2 + $0x4] sm:$0xff]
      %v1016 = vld [vmem:[#allocation2 + $0xc] sm:$0xf]
      %s1017 = scalar_lea.vmem %s1, 32
      %v1018 = vld [vmem:[%s1017] sm:$0xf]
      %v1021 = vcombine.high %v1015, %v1015
      %1022 = vrot.lane.b32.xlu0 %v1015, 111
      %v1023 = vpop.permute.xlu0 %1022
      %1024 = vrot.lane.b32.xlu0 %v1021, 111
      %v1025 = vpop.permute.xlu0 %1024
      %1026 = vrot.lane.b32.xlu0 %v1016, 111
      %v1027 = vpop.permute.xlu0 %1026
      %vm1028 = vcmask 908288
      %v1029 = vsel %vm1028, %v1023, %v1025
      %v1030 = vsel %vm1028, %v1025, %v1027
      %v1032 = vsel %vm281, %v1018, 0
      %v1034 = vsel %vm285, %v1029, 0
      %v1036 = vsel %vm285, %v1030, 0
      %1038 = vmatprep.subr.mxu0 %v1036
      %1039 = vmatpush1.msra.mxu0 %v1034
      %1040 = vmatprep.subr.mxu0 0.0
      %1041 = vmatpush1.msra.mxu0 0.0
      %1042 = vmatprep.subr.mxu0 0.0
      %1043 = vmatpush1.msra.mxu0 0.0
      %1044 = vmatprep.subr.mxu0 0.0
      %1045 = vmatpush1.msra.mxu0 0.0
      %1046 = vmatprep.subr.mxu0 0.0
      %1047 = vmatpush1.msra.mxu0 0.0
      %1048 = vmatprep.subr.mxu0 0.0
      %1049 = vmatpush1.msra.mxu0 0.0
      %1050 = vmatprep.subr.mxu0 0.0
      %1051 = vmatpush1.msra.mxu0 0.0
      %1052 = vmatprep.subr.mxu0 0.0
      %1053 = vmatpush1.msra.mxu0 0.0
      %1054 = vmatprep.subr.mxu0 0.0
      %1055 = vmatpush1.msra.mxu0 0.0
      %1056 = vmatprep.subr.mxu0 0.0
      %1057 = vmatpush1.msra.mxu0 0.0
      %1058 = vmatprep.subr.mxu0 0.0
      %1059 = vmatpush1.msra.mxu0 0.0
      %1060 = vmatprep.subr.mxu0 0.0
      %1061 = vmatpush1.msra.mxu0 0.0
      %1062 = vmatprep.subr.mxu0 0.0
      %1063 = vmatpush1.msra.mxu0 0.0
      %1064 = vmatprep.subr.mxu0 0.0
      %1065 = vmatpush1.msra.mxu0 0.0
      %1066 = vmatprep.subr.mxu0 0.0
      %1067 = vmatpush1.msra.mxu0 0.0
      %1068 = vmatprep.subr.mxu0 0.0
      %1069 = vmatpush1.msra.mxu0 0.0
      %1070 = vmatprep.subr.mxu0 0.0
      %1071 = vmatpush1.msra.mxu0 0.0
      %1072 = vmatprep.subr.mxu0 0.0
      %1073 = vmatpush1.msra.mxu0 0.0
      %1074 = vmatprep.subr.mxu0 0.0
      %1075 = vmatpush1.msra.mxu0 0.0
      %1076 = vmatprep.subr.mxu0 0.0
      %1077 = vmatpush1.msra.mxu0 0.0
      %1078 = vmatprep.subr.mxu0 0.0
      %1079 = vmatpush1.msra.mxu0 0.0
      %1080 = vmatprep.subr.mxu0 0.0
      %1081 = vmatpush1.msra.mxu0 0.0
      %1082 = vmatprep.subr.mxu0 0.0
      %1083 = vmatpush1.msra.mxu0 0.0
      %1084 = vmatprep.subr.mxu0 0.0
      %1085 = vmatpush1.msra.mxu0 0.0
      %1086 = vmatprep.subr.mxu0 0.0
      %1087 = vmatpush1.msra.mxu0 0.0
      %1088 = vmatprep.subr.mxu0 0.0
      %1089 = vmatpush1.msra.mxu0 0.0
      %1090 = vmatprep.subr.mxu0 0.0
      %1091 = vmatpush1.msra.mxu0 0.0
      %1092 = vmatprep.subr.mxu0 0.0
      %1093 = vmatpush1.msra.mxu0 0.0
      %1094 = vmatprep.subr.mxu0 0.0
      %1095 = vmatpush1.msra.mxu0 0.0
      %1096 = vmatprep.subr.mxu0 0.0
      %1097 = vmatpush1.msra.mxu0 0.0
      %1098 = vmatprep.subr.mxu0 0.0
      %1099 = vmatpush1.msra.mxu0 0.0
      %1100 = vmatprep.subr.mxu0 0.0
      %1101 = vmatpush1.msra.mxu0 0.0
      %1102 = vmatprep.mubr.f32.mxu0 0.0
      %1103 = vmatmul.mubr.f32.gmra.mrb[0].mxu0 %v1032
      %v1104 = vpop.f32.mrb[0].mxu0
      %v1105 = vadd.f32 0.0, %v1104
      %v1106 = vpop.f32.mrb[0].mxu0
      %v1107 = vadd.f32 0.0, %v1106
      %1108 = vdwg.mxu0
      %v1109 = vadd.f32 %v1011, %v1105
      %v1110 = vadd.f32 %v1013, %v1107
      %v1111 = vsel %vm254, 1, 0
      %v1112 = vsel %vm255, 1, 0
      %vm1113 = vcmp.eq.s32.totalorder %v1111, 1
      %vm1114 = vcmp.eq.s32.totalorder %v1112, 1
      %v1115 = vsel %vm1113, %v1109, 0.0
      %v1116 = vsel %vm1114, %v1110, 0.0
      %v1117 = vadd.f32 %v825, %v1115
      %v1118 = vadd.f32 %v826, %v1116
      %1120 = vset.pattern.permute.xlu0 0
      %1121 = vperm.xlu0 %1120, %v256
      %v1122 = vpop.permute.xlu0 %1121
      %v1124 = vadd.f32 %v1117, %v1122
      %v1125 = vadd.f32 %v1118, %v1122
      %v1126 = vmax.f32 %v1124, 0.0
      %v1127 = vmax.f32 %v1125, 0.0
      %v1130 = vcombine.low %v1126, %v1127
      %1132 = vst [vmem:[#allocation2 + $0x4] sm:$0xff] %v1130
      %v1133 = vld [vmem:[#allocation2] sm:$0xff]
      %v1134 = vld [vmem:[#allocation2 + $0x8] sm:$0xf]
      %v1135 = vld [vmem:[%s3] sm:$0xf]
      %s1136 = scalar_lea.vmem %s3, 12
      %v1137 = vld [vmem:[%s1136] sm:$0xf]
      %v1140 = vcombine.high %v1133, %v1133
      %1141 = vrot.lane.b32.xlu0 %v1133, 1
      %v1142 = vpop.permute.xlu0 %1141
      %1143 = vrot.lane.b32.xlu0 %v1140, 1
      %v1144 = vpop.permute.xlu0 %1143
      %1145 = vrot.lane.b32.xlu0 %v1134, 1
      %v1146 = vpop.permute.xlu0 %1145
      %v1147 = vsel %vm278, %v1142, %v1144
      %v1148 = vsel %vm278, %v1144, %v1146
      %v1150 = vsel %vm281, %v1137, 0
      %v1152 = vsel %vm285, %v1147, 0
      %v1154 = vsel %vm285, %v1148, 0
      %1156 = vmatprep.subr.mxu0 %v1154
      %1157 = vmatpush1.msra.mxu0 %v1152
      %1158 = vmatprep.subr.mxu0 0.0
      %1159 = vmatpush1.msra.mxu0 0.0
      %1160 = vmatprep.subr.mxu0 0.0
      %1161 = vmatpush1.msra.mxu0 0.0
      %1162 = vmatprep.subr.mxu0 0.0
      %1163 = vmatpush1.msra.mxu0 0.0
      %1164 = vmatprep.subr.mxu0 0.0
      %1165 = vmatpush1.msra.mxu0 0.0
      %1166 = vmatprep.subr.mxu0 0.0
      %1167 = vmatpush1.msra.mxu0 0.0
      %1168 = vmatprep.subr.mxu0 0.0
      %1169 = vmatpush1.msra.mxu0 0.0
      %1170 = vmatprep.subr.mxu0 0.0
      %1171 = vmatpush1.msra.mxu0 0.0
      %1172 = vmatprep.subr.mxu0 0.0
      %1173 = vmatpush1.msra.mxu0 0.0
      %1174 = vmatprep.subr.mxu0 0.0
      %1175 = vmatpush1.msra.mxu0 0.0
      %1176 = vmatprep.subr.mxu0 0.0
      %1177 = vmatpush1.msra.mxu0 0.0
      %1178 = vmatprep.subr.mxu0 0.0
      %1179 = vmatpush1.msra.mxu0 0.0
      %1180 = vmatprep.subr.mxu0 0.0
      %1181 = vmatpush1.msra.mxu0 0.0
      %1182 = vmatprep.subr.mxu0 0.0
      %1183 = vmatpush1.msra.mxu0 0.0
      %1184 = vmatprep.subr.mxu0 0.0
      %1185 = vmatpush1.msra.mxu0 0.0
      %1186 = vmatprep.subr.mxu0 0.0
      %1187 = vmatpush1.msra.mxu0 0.0
      %1188 = vmatprep.subr.mxu0 0.0
      %1189 = vmatpush1.msra.mxu0 0.0
      %1190 = vmatprep.subr.mxu0 0.0
      %1191 = vmatpush1.msra.mxu0 0.0
      %1192 = vmatprep.subr.mxu0 0.0
      %1193 = vmatpush1.msra.mxu0 0.0
      %1194 = vmatprep.subr.mxu0 0.0
      %1195 = vmatpush1.msra.mxu0 0.0
      %1196 = vmatprep.subr.mxu0 0.0
      %1197 = vmatpush1.msra.mxu0 0.0
      %1198 = vmatprep.subr.mxu0 0.0
      %1199 = vmatpush1.msra.mxu0 0.0
      %1200 = vmatprep.subr.mxu0 0.0
      %1201 = vmatpush1.msra.mxu0 0.0
      %1202 = vmatprep.subr.mxu0 0.0
      %1203 = vmatpush1.msra.mxu0 0.0
      %1204 = vmatprep.subr.mxu0 0.0
      %1205 = vmatpush1.msra.mxu0 0.0
      %1206 = vmatprep.subr.mxu0 0.0
      %1207 = vmatpush1.msra.mxu0 0.0
      %1208 = vmatprep.subr.mxu0 0.0
      %1209 = vmatpush1.msra.mxu0 0.0
      %1210 = vmatprep.subr.mxu0 0.0
      %1211 = vmatpush1.msra.mxu0 0.0
      %1212 = vmatprep.subr.mxu0 0.0
      %1213 = vmatpush1.msra.mxu0 0.0
      %1214 = vmatprep.subr.mxu0 0.0
      %1215 = vmatpush1.msra.mxu0 0.0
      %1216 = vmatprep.subr.mxu0 0.0
      %1217 = vmatpush1.msra.mxu0 0.0
      %1218 = vmatprep.subr.mxu0 0.0
      %1219 = vmatpush1.msra.mxu0 0.0
      %1220 = vmatprep.mubr.f32.mxu0 0.0
      %1221 = vmatmul.mubr.f32.gmra.mrb[0].mxu0 %v1150
      %v1222 = vpop.f32.mrb[0].mxu0
      %v1223 = vadd.f32 0.0, %v1222
      %v1224 = vpop.f32.mrb[0].mxu0
      %v1225 = vadd.f32 0.0, %v1224
      %1226 = vdwg.mxu0
      %1227 = vrot.lane.b32.xlu0 %v1133, 17
      %v1228 = vpop.permute.xlu0 %1227
      %1229 = vrot.lane.b32.xlu0 %v1140, 17
      %v1230 = vpop.permute.xlu0 %1229
      %1231 = vrot.lane.b32.xlu0 %v1134, 17
      %v1232 = vpop.permute.xlu0 %1231
      %v1233 = vsel %vm367, %v1228, %v1230
      %v1234 = vsel %vm367, %v1230, %v1232
      %v1236 = vsel %vm281, %v1135, 0
      %v1238 = vsel %vm285, %v1233, 0
      %v1240 = vsel %vm285, %v1234, 0
      %1242 = vmatprep.subr.mxu0 %v1240
      %1243 = vmatpush1.msra.mxu0 %v1238
      %1244 = vmatprep.subr.mxu0 0.0
      %1245 = vmatpush1.msra.mxu0 0.0
      %1246 = vmatprep.subr.mxu0 0.0
      %1247 = vmatpush1.msra.mxu0 0.0
      %1248 = vmatprep.subr.mxu0 0.0
      %1249 = vmatpush1.msra.mxu0 0.0
      %1250 = vmatprep.subr.mxu0 0.0
      %1251 = vmatpush1.msra.mxu0 0.0
      %1252 = vmatprep.subr.mxu0 0.0
      %1253 = vmatpush1.msra.mxu0 0.0
      %1254 = vmatprep.subr.mxu0 0.0
      %1255 = vmatpush1.msra.mxu0 0.0
      %1256 = vmatprep.subr.mxu0 0.0
      %1257 = vmatpush1.msra.mxu0 0.0
      %1258 = vmatprep.subr.mxu0 0.0
      %1259 = vmatpush1.msra.mxu0 0.0
      %1260 = vmatprep.subr.mxu0 0.0
      %1261 = vmatpush1.msra.mxu0 0.0
      %1262 = vmatprep.subr.mxu0 0.0
      %1263 = vmatpush1.msra.mxu0 0.0
      %1264 = vmatprep.subr.mxu0 0.0
      %1265 = vmatpush1.msra.mxu0 0.0
      %1266 = vmatprep.subr.mxu0 0.0
      %1267 = vmatpush1.msra.mxu0 0.0
      %1268 = vmatprep.subr.mxu0 0.0
      %1269 = vmatpush1.msra.mxu0 0.0
      %1270 = vmatprep.subr.mxu0 0.0
      %1271 = vmatpush1.msra.mxu0 0.0
      %1272 = vmatprep.subr.mxu0 0.0
      %1273 = vmatpush1.msra.mxu0 0.0
      %1274 = vmatprep.subr.mxu0 0.0
      %1275 = vmatpush1.msra.mxu0 0.0
      %1276 = vmatprep.subr.mxu0 0.0
      %1277 = vmatpush1.msra.mxu0 0.0
      %1278 = vmatprep.subr.mxu0 0.0
      %1279 = vmatpush1.msra.mxu0 0.0
      %1280 = vmatprep.subr.mxu0 0.0
      %1281 = vmatpush1.msra.mxu0 0.0
      %1282 = vmatprep.subr.mxu0 0.0
      %1283 = vmatpush1.msra.mxu0 0.0
      %1284 = vmatprep.subr.mxu0 0.0
      %1285 = vmatpush1.msra.mxu0 0.0
      %1286 = vmatprep.subr.mxu0 0.0
      %1287 = vmatpush1.msra.mxu0 0.0
      %1288 = vmatprep.subr.mxu0 0.0
      %1289 = vmatpush1.msra.mxu0 0.0
      %1290 = vmatprep.subr.mxu0 0.0
      %1291 = vmatpush1.msra.mxu0 0.0
      %1292 = vmatprep.subr.mxu0 0.0
      %1293 = vmatpush1.msra.mxu0 0.0
      %1294 = vmatprep.subr.mxu0 0.0
      %1295 = vmatpush1.msra.mxu0 0.0
      %1296 = vmatprep.subr.mxu0 0.0
      %1297 = vmatpush1.msra.mxu0 0.0
      %1298 = vmatprep.subr.mxu0 0.0
      %1299 = vmatpush1.msra.mxu0 0.0
      %1300 = vmatprep.subr.mxu0 0.0
      %1301 = vmatpush1.msra.mxu0 0.0
      %1302 = vmatprep.subr.mxu0 0.0
      %1303 = vmatpush1.msra.mxu0 0.0
      %1304 = vmatprep.subr.mxu0 0.0
      %1305 = vmatpush1.msra.mxu0 0.0
      %1306 = vmatprep.mubr.f32.mxu0 0.0
      %1307 = vmatmul.mubr.f32.gmra.mrb[0].mxu0 %v1236
      %v1308 = vpop.f32.mrb[0].mxu0
      %v1309 = vadd.f32 %v1223, %v1308
      %v1310 = vpop.f32.mrb[0].mxu0
      %v1311 = vadd.f32 %v1225, %v1310
      %1312 = vdwg.mxu0
      %v1313 = vld [vmem:[#allocation2 + $0x4] sm:$0xff]
      %v1314 = vld [vmem:[#allocation2 + $0xc] sm:$0xf]
      %s1315 = scalar_lea.vmem %s3, 24
      %v1316 = vld [vmem:[%s1315] sm:$0xf]
      %v1319 = vcombine.high %v1313, %v1313
      %1320 = vrot.lane.b32.xlu0 %v1313, 113
      %v1321 = vpop.permute.xlu0 %1320
      %1322 = vrot.lane.b32.xlu0 %v1319, 113
      %v1323 = vpop.permute.xlu0 %1322
      %1324 = vrot.lane.b32.xlu0 %v1314, 113
      %v1325 = vpop.permute.xlu0 %1324
      %v1326 = vsel %vm461, %v1321, %v1323
      %v1327 = vsel %vm461, %v1323, %v1325
      %v1329 = vsel %vm281, %v1316, 0
      %v1331 = vsel %vm285, %v1326, 0
      %v1333 = vsel %vm285, %v1327, 0
      %1335 = vmatprep.subr.mxu0 %v1333
      %1336 = vmatpush1.msra.mxu0 %v1331
      %1337 = vmatprep.subr.mxu0 0.0
      %1338 = vmatpush1.msra.mxu0 0.0
      %1339 = vmatprep.subr.mxu0 0.0
      %1340 = vmatpush1.msra.mxu0 0.0
      %1341 = vmatprep.subr.mxu0 0.0
      %1342 = vmatpush1.msra.mxu0 0.0
      %1343 = vmatprep.subr.mxu0 0.0
      %1344 = vmatpush1.msra.mxu0 0.0
      %1345 = vmatprep.subr.mxu0 0.0
      %1346 = vmatpush1.msra.mxu0 0.0
      %1347 = vmatprep.subr.mxu0 0.0
      %1348 = vmatpush1.msra.mxu0 0.0
      %1349 = vmatprep.subr.mxu0 0.0
      %1350 = vmatpush1.msra.mxu0 0.0
      %1351 = vmatprep.subr.mxu0 0.0
      %1352 = vmatpush1.msra.mxu0 0.0
      %1353 = vmatprep.subr.mxu0 0.0
      %1354 = vmatpush1.msra.mxu0 0.0
      %1355 = vmatprep.subr.mxu0 0.0
      %1356 = vmatpush1.msra.mxu0 0.0
      %1357 = vmatprep.subr.mxu0 0.0
      %1358 = vmatpush1.msra.mxu0 0.0
      %1359 = vmatprep.subr.mxu0 0.0
      %1360 = vmatpush1.msra.mxu0 0.0
      %1361 = vmatprep.subr.mxu0 0.0
      %1362 = vmatpush1.msra.mxu0 0.0
      %1363 = vmatprep.subr.mxu0 0.0
      %1364 = vmatpush1.msra.mxu0 0.0
      %1365 = vmatprep.subr.mxu0 0.0
      %1366 = vmatpush1.msra.mxu0 0.0
      %1367 = vmatprep.subr.mxu0 0.0
      %1368 = vmatpush1.msra.mxu0 0.0
      %1369 = vmatprep.subr.mxu0 0.0
      %1370 = vmatpush1.msra.mxu0 0.0
      %1371 = vmatprep.subr.mxu0 0.0
      %1372 = vmatpush1.msra.mxu0 0.0
      %1373 = vmatprep.subr.mxu0 0.0
      %1374 = vmatpush1.msra.mxu0 0.0
      %1375 = vmatprep.subr.mxu0 0.0
      %1376 = vmatpush1.msra.mxu0 0.0
      %1377 = vmatprep.subr.mxu0 0.0
      %1378 = vmatpush1.msra.mxu0 0.0
      %1379 = vmatprep.subr.mxu0 0.0
      %1380 = vmatpush1.msra.mxu0 0.0
      %1381 = vmatprep.subr.mxu0 0.0
      %1382 = vmatpush1.msra.mxu0 0.0
      %1383 = vmatprep.subr.mxu0 0.0
      %1384 = vmatpush1.msra.mxu0 0.0
      %1385 = vmatprep.subr.mxu0 0.0
      %1386 = vmatpush1.msra.mxu0 0.0
      %1387 = vmatprep.subr.mxu0 0.0
      %1388 = vmatpush1.msra.mxu0 0.0
      %1389 = vmatprep.subr.mxu0 0.0
      %1390 = vmatpush1.msra.mxu0 0.0
      %1391 = vmatprep.subr.mxu0 0.0
      %1392 = vmatpush1.msra.mxu0 0.0
      %1393 = vmatprep.subr.mxu0 0.0
      %1394 = vmatpush1.msra.mxu0 0.0
      %1395 = vmatprep.subr.mxu0 0.0
      %1396 = vmatpush1.msra.mxu0 0.0
      %1397 = vmatprep.subr.mxu0 0.0
      %1398 = vmatpush1.msra.mxu0 0.0
      %1399 = vmatprep.mubr.f32.mxu0 0.0
      %1400 = vmatmul.mubr.f32.gmra.mrb[0].mxu0 %v1329
      %v1401 = vpop.f32.mrb[0].mxu0
      %v1402 = vadd.f32 0.0, %v1401
      %v1403 = vpop.f32.mrb[0].mxu0
      %v1404 = vadd.f32 0.0, %v1403
      %1405 = vdwg.mxu0
      %v1406 = vadd.f32 %v1309, %v1402
      %v1407 = vadd.f32 %v1311, %v1404
      %v1408 = vsel %vm546, %v1406, 0.0
      %v1409 = vsel %vm547, %v1407, 0.0
      %v1410 = vadd.f32 %v1408, 0.0
      %v1411 = vadd.f32 %v1409, 0.0
      %v1412 = vld [vmem:[#allocation2] sm:$0xff]
      %v1413 = vld [vmem:[#allocation2 + $0x8] sm:$0xf]
      %s1414 = scalar_lea.vmem %s3, 4
      %v1415 = vld [vmem:[%s1414] sm:$0xf]
      %v1416 = vld [vmem:[#allocation2 + $0x4] sm:$0xff]
      %s1417 = scalar_lea.vmem %s3, 16
      %v1418 = vld [vmem:[%s1417] sm:$0xf]
      %v1420 = vcombine.high %v1416, %v1416
      %v1422 = vsel %vm281, %v1418, 0
      %v1424 = vsel %vm285, %v1416, 0
      %v1426 = vsel %vm285, %v1420, 0
      %1428 = vmatprep.subr.mxu0 %v1426
      %1429 = vmatpush1.msra.mxu0 %v1424
      %1430 = vmatprep.subr.mxu0 0.0
      %1431 = vmatpush1.msra.mxu0 0.0
      %1432 = vmatprep.subr.mxu0 0.0
      %1433 = vmatpush1.msra.mxu0 0.0
      %1434 = vmatprep.subr.mxu0 0.0
      %1435 = vmatpush1.msra.mxu0 0.0
      %1436 = vmatprep.subr.mxu0 0.0
      %1437 = vmatpush1.msra.mxu0 0.0
      %1438 = vmatprep.subr.mxu0 0.0
      %1439 = vmatpush1.msra.mxu0 0.0
      %1440 = vmatprep.subr.mxu0 0.0
      %1441 = vmatpush1.msra.mxu0 0.0
      %1442 = vmatprep.subr.mxu0 0.0
      %1443 = vmatpush1.msra.mxu0 0.0
      %1444 = vmatprep.subr.mxu0 0.0
      %1445 = vmatpush1.msra.mxu0 0.0
      %1446 = vmatprep.subr.mxu0 0.0
      %1447 = vmatpush1.msra.mxu0 0.0
      %1448 = vmatprep.subr.mxu0 0.0
      %1449 = vmatpush1.msra.mxu0 0.0
      %1450 = vmatprep.subr.mxu0 0.0
      %1451 = vmatpush1.msra.mxu0 0.0
      %1452 = vmatprep.subr.mxu0 0.0
      %1453 = vmatpush1.msra.mxu0 0.0
      %1454 = vmatprep.subr.mxu0 0.0
      %1455 = vmatpush1.msra.mxu0 0.0
      %1456 = vmatprep.subr.mxu0 0.0
      %1457 = vmatpush1.msra.mxu0 0.0
      %1458 = vmatprep.subr.mxu0 0.0
      %1459 = vmatpush1.msra.mxu0 0.0
      %1460 = vmatprep.subr.mxu0 0.0
      %1461 = vmatpush1.msra.mxu0 0.0
      %1462 = vmatprep.subr.mxu0 0.0
      %1463 = vmatpush1.msra.mxu0 0.0
      %1464 = vmatprep.subr.mxu0 0.0
      %1465 = vmatpush1.msra.mxu0 0.0
      %1466 = vmatprep.subr.mxu0 0.0
      %1467 = vmatpush1.msra.mxu0 0.0
      %1468 = vmatprep.subr.mxu0 0.0
      %1469 = vmatpush1.msra.mxu0 0.0
      %1470 = vmatprep.subr.mxu0 0.0
      %1471 = vmatpush1.msra.mxu0 0.0
      %1472 = vmatprep.subr.mxu0 0.0
      %1473 = vmatpush1.msra.mxu0 0.0
      %1474 = vmatprep.subr.mxu0 0.0
      %1475 = vmatpush1.msra.mxu0 0.0
      %1476 = vmatprep.subr.mxu0 0.0
      %1477 = vmatpush1.msra.mxu0 0.0
      %1478 = vmatprep.subr.mxu0 0.0
      %1479 = vmatpush1.msra.mxu0 0.0
      %1480 = vmatprep.subr.mxu0 0.0
      %1481 = vmatpush1.msra.mxu0 0.0
      %1482 = vmatprep.subr.mxu0 0.0
      %1483 = vmatpush1.msra.mxu0 0.0
      %1484 = vmatprep.subr.mxu0 0.0
      %1485 = vmatpush1.msra.mxu0 0.0
      %1486 = vmatprep.subr.mxu0 0.0
      %1487 = vmatpush1.msra.mxu0 0.0
      %1488 = vmatprep.subr.mxu0 0.0
      %1489 = vmatpush1.msra.mxu0 0.0
      %1490 = vmatprep.subr.mxu0 0.0
      %1491 = vmatpush1.msra.mxu0 0.0
      %1492 = vmatprep.mubr.f32.mxu0 0.0
      %1493 = vmatmul.mubr.f32.gmra.mrb[0].mxu0 %v1422
      %v1494 = vpop.f32.mrb[0].mxu0
      %v1495 = vadd.f32 0.0, %v1494
      %v1496 = vpop.f32.mrb[0].mxu0
      %v1497 = vadd.f32 0.0, %v1496
      %1498 = vdwg.mxu0
      %v1501 = vcombine.high %v1412, %v1412
      %1502 = vrot.lane.b32.xlu0 %v1412, 16
      %v1503 = vpop.permute.xlu0 %1502
      %1504 = vrot.lane.b32.xlu0 %v1501, 16
      %v1505 = vpop.permute.xlu0 %1504
      %1506 = vrot.lane.b32.xlu0 %v1413, 16
      %v1507 = vpop.permute.xlu0 %1506
      %v1508 = vsel %vm648, %v1503, %v1505
      %v1509 = vsel %vm648, %v1505, %v1507
      %v1511 = vsel %vm281, %v1415, 0
      %v1513 = vsel %vm285, %v1508, 0
      %v1515 = vsel %vm285, %v1509, 0
      %1517 = vmatprep.subr.mxu0 %v1515
      %1518 = vmatpush1.msra.mxu0 %v1513
      %1519 = vmatprep.subr.mxu0 0.0
      %1520 = vmatpush1.msra.mxu0 0.0
      %1521 = vmatprep.subr.mxu0 0.0
      %1522 = vmatpush1.msra.mxu0 0.0
      %1523 = vmatprep.subr.mxu0 0.0
      %1524 = vmatpush1.msra.mxu0 0.0
      %1525 = vmatprep.subr.mxu0 0.0
      %1526 = vmatpush1.msra.mxu0 0.0
      %1527 = vmatprep.subr.mxu0 0.0
      %1528 = vmatpush1.msra.mxu0 0.0
      %1529 = vmatprep.subr.mxu0 0.0
      %1530 = vmatpush1.msra.mxu0 0.0
      %1531 = vmatprep.subr.mxu0 0.0
      %1532 = vmatpush1.msra.mxu0 0.0
      %1533 = vmatprep.subr.mxu0 0.0
      %1534 = vmatpush1.msra.mxu0 0.0
      %1535 = vmatprep.subr.mxu0 0.0
      %1536 = vmatpush1.msra.mxu0 0.0
      %1537 = vmatprep.subr.mxu0 0.0
      %1538 = vmatpush1.msra.mxu0 0.0
      %1539 = vmatprep.subr.mxu0 0.0
      %1540 = vmatpush1.msra.mxu0 0.0
      %1541 = vmatprep.subr.mxu0 0.0
      %1542 = vmatpush1.msra.mxu0 0.0
      %1543 = vmatprep.subr.mxu0 0.0
      %1544 = vmatpush1.msra.mxu0 0.0
      %1545 = vmatprep.subr.mxu0 0.0
      %1546 = vmatpush1.msra.mxu0 0.0
      %1547 = vmatprep.subr.mxu0 0.0
      %1548 = vmatpush1.msra.mxu0 0.0
      %1549 = vmatprep.subr.mxu0 0.0
      %1550 = vmatpush1.msra.mxu0 0.0
      %1551 = vmatprep.subr.mxu0 0.0
      %1552 = vmatpush1.msra.mxu0 0.0
      %1553 = vmatprep.subr.mxu0 0.0
      %1554 = vmatpush1.msra.mxu0 0.0
      %1555 = vmatprep.subr.mxu0 0.0
      %1556 = vmatpush1.msra.mxu0 0.0
      %1557 = vmatprep.subr.mxu0 0.0
      %1558 = vmatpush1.msra.mxu0 0.0
      %1559 = vmatprep.subr.mxu0 0.0
      %1560 = vmatpush1.msra.mxu0 0.0
      %1561 = vmatprep.subr.mxu0 0.0
      %1562 = vmatpush1.msra.mxu0 0.0
      %1563 = vmatprep.subr.mxu0 0.0
      %1564 = vmatpush1.msra.mxu0 0.0
      %1565 = vmatprep.subr.mxu0 0.0
      %1566 = vmatpush1.msra.mxu0 0.0
      %1567 = vmatprep.subr.mxu0 0.0
      %1568 = vmatpush1.msra.mxu0 0.0
      %1569 = vmatprep.subr.mxu0 0.0
      %1570 = vmatpush1.msra.mxu0 0.0
      %1571 = vmatprep.subr.mxu0 0.0
      %1572 = vmatpush1.msra.mxu0 0.0
      %1573 = vmatprep.subr.mxu0 0.0
      %1574 = vmatpush1.msra.mxu0 0.0
      %1575 = vmatprep.subr.mxu0 0.0
      %1576 = vmatpush1.msra.mxu0 0.0
      %1577 = vmatprep.subr.mxu0 0.0
      %1578 = vmatpush1.msra.mxu0 0.0
      %1579 = vmatprep.subr.mxu0 0.0
      %1580 = vmatpush1.msra.mxu0 0.0
      %1581 = vmatprep.mubr.f32.mxu0 0.0
      %1582 = vmatmul.mubr.f32.gmra.mrb[0].mxu0 %v1511
      %v1583 = vpop.f32.mrb[0].mxu0
      %v1584 = vadd.f32 %v1495, %v1583
      %v1585 = vpop.f32.mrb[0].mxu0
      %v1586 = vadd.f32 %v1497, %v1585
      %1587 = vdwg.mxu0
      %v1588 = vld [vmem:[#allocation2 + $0x4] sm:$0xff]
      %v1589 = vld [vmem:[#allocation2 + $0xc] sm:$0xf]
      %s1590 = scalar_lea.vmem %s3, 28
      %v1591 = vld [vmem:[%s1590] sm:$0xf]
      %v1594 = vcombine.high %v1588, %v1588
      %1595 = vrot.lane.b32.xlu0 %v1588, 112
      %v1596 = vpop.permute.xlu0 %1595
      %1597 = vrot.lane.b32.xlu0 %v1594, 112
      %v1598 = vpop.permute.xlu0 %1597
      %1599 = vrot.lane.b32.xlu0 %v1589, 112
      %v1600 = vpop.permute.xlu0 %1599
      %v1601 = vsel %vm742, %v1596, %v1598
      %v1602 = vsel %vm742, %v1598, %v1600
      %v1604 = vsel %vm281, %v1591, 0
      %v1606 = vsel %vm285, %v1601, 0
      %v1608 = vsel %vm285, %v1602, 0
      %1610 = vmatprep.subr.mxu0 %v1608
      %1611 = vmatpush1.msra.mxu0 %v1606
      %1612 = vmatprep.subr.mxu0 0.0
      %1613 = vmatpush1.msra.mxu0 0.0
      %1614 = vmatprep.subr.mxu0 0.0
      %1615 = vmatpush1.msra.mxu0 0.0
      %1616 = vmatprep.subr.mxu0 0.0
      %1617 = vmatpush1.msra.mxu0 0.0
      %1618 = vmatprep.subr.mxu0 0.0
      %1619 = vmatpush1.msra.mxu0 0.0
      %1620 = vmatprep.subr.mxu0 0.0
      %1621 = vmatpush1.msra.mxu0 0.0
      %1622 = vmatprep.subr.mxu0 0.0
      %1623 = vmatpush1.msra.mxu0 0.0
      %1624 = vmatprep.subr.mxu0 0.0
      %1625 = vmatpush1.msra.mxu0 0.0
      %1626 = vmatprep.subr.mxu0 0.0
      %1627 = vmatpush1.msra.mxu0 0.0
      %1628 = vmatprep.subr.mxu0 0.0
      %1629 = vmatpush1.msra.mxu0 0.0
      %1630 = vmatprep.subr.mxu0 0.0
      %1631 = vmatpush1.msra.mxu0 0.0
      %1632 = vmatprep.subr.mxu0 0.0
      %1633 = vmatpush1.msra.mxu0 0.0
      %1634 = vmatprep.subr.mxu0 0.0
      %1635 = vmatpush1.msra.mxu0 0.0
      %1636 = vmatprep.subr.mxu0 0.0
      %1637 = vmatpush1.msra.mxu0 0.0
      %1638 = vmatprep.subr.mxu0 0.0
      %1639 = vmatpush1.msra.mxu0 0.0
      %1640 = vmatprep.subr.mxu0 0.0
      %1641 = vmatpush1.msra.mxu0 0.0
      %1642 = vmatprep.subr.mxu0 0.0
      %1643 = vmatpush1.msra.mxu0 0.0
      %1644 = vmatprep.subr.mxu0 0.0
      %1645 = vmatpush1.msra.mxu0 0.0
      %1646 = vmatprep.subr.mxu0 0.0
      %1647 = vmatpush1.msra.mxu0 0.0
      %1648 = vmatprep.subr.mxu0 0.0
      %1649 = vmatpush1.msra.mxu0 0.0
      %1650 = vmatprep.subr.mxu0 0.0
      %1651 = vmatpush1.msra.mxu0 0.0
      %1652 = vmatprep.subr.mxu0 0.0
      %1653 = vmatpush1.msra.mxu0 0.0
      %1654 = vmatprep.subr.mxu0 0.0
      %1655 = vmatpush1.msra.mxu0 0.0
      %1656 = vmatprep.subr.mxu0 0.0
      %1657 = vmatpush1.msra.mxu0 0.0
      %1658 = vmatprep.subr.mxu0 0.0
      %1659 = vmatpush1.msra.mxu0 0.0
      %1660 = vmatprep.subr.mxu0 0.0
      %1661 = vmatpush1.msra.mxu0 0.0
      %1662 = vmatprep.subr.mxu0 0.0
      %1663 = vmatpush1.msra.mxu0 0.0
      %1664 = vmatprep.subr.mxu0 0.0
      %1665 = vmatpush1.msra.mxu0 0.0
      %1666 = vmatprep.subr.mxu0 0.0
      %1667 = vmatpush1.msra.mxu0 0.0
      %1668 = vmatprep.subr.mxu0 0.0
      %1669 = vmatpush1.msra.mxu0 0.0
      %1670 = vmatprep.subr.mxu0 0.0
      %1671 = vmatpush1.msra.mxu0 0.0
      %1672 = vmatprep.subr.mxu0 0.0
      %1673 = vmatpush1.msra.mxu0 0.0
      %1674 = vmatprep.mubr.f32.mxu0 0.0
      %1675 = vmatmul.mubr.f32.gmra.mrb[0].mxu0 %v1604
      %v1676 = vpop.f32.mrb[0].mxu0
      %v1677 = vadd.f32 0.0, %v1676
      %v1678 = vpop.f32.mrb[0].mxu0
      %v1679 = vadd.f32 0.0, %v1678
      %1680 = vdwg.mxu0
      %v1681 = vadd.f32 %v1584, %v1677
      %v1682 = vadd.f32 %v1586, %v1679
      %v1683 = vadd.f32 %v1410, %v1681
      %v1684 = vadd.f32 %v1411, %v1682
      %v1685 = vld [vmem:[#allocation2] sm:$0xff]
      %v1686 = vld [vmem:[#allocation2 + $0x8] sm:$0xf]
      %s1687 = scalar_lea.vmem %s3, 8
      %v1688 = vld [vmem:[%s1687] sm:$0xf]
      %v1689 = vld [vmem:[#allocation2 + $0x4] sm:$0xff]
      %v1690 = vld [vmem:[#allocation2 + $0xc] sm:$0xf]
      %s1691 = scalar_lea.vmem %s3, 20
      %v1692 = vld [vmem:[%s1691] sm:$0xf]
      %v1695 = vcombine.high %v1689, %v1689
      %1696 = vrot.lane.b32.xlu0 %v1689, 127
      %v1697 = vpop.permute.xlu0 %1696
      %1698 = vrot.lane.b32.xlu0 %v1695, 127
      %v1699 = vpop.permute.xlu0 %1698
      %1700 = vrot.lane.b32.xlu0 %v1690, 127
      %v1701 = vpop.permute.xlu0 %1700
      %v1702 = vsel %vm844, %v1697, %v1699
      %v1703 = vsel %vm844, %v1699, %v1701
      %v1705 = vsel %vm281, %v1692, 0
      %v1707 = vsel %vm285, %v1702, 0
      %v1709 = vsel %vm285, %v1703, 0
      %1711 = vmatprep.subr.mxu0 %v1709
      %1712 = vmatpush1.msra.mxu0 %v1707
      %1713 = vmatprep.subr.mxu0 0.0
      %1714 = vmatpush1.msra.mxu0 0.0
      %1715 = vmatprep.subr.mxu0 0.0
      %1716 = vmatpush1.msra.mxu0 0.0
      %1717 = vmatprep.subr.mxu0 0.0
      %1718 = vmatpush1.msra.mxu0 0.0
      %1719 = vmatprep.subr.mxu0 0.0
      %1720 = vmatpush1.msra.mxu0 0.0
      %1721 = vmatprep.subr.mxu0 0.0
      %1722 = vmatpush1.msra.mxu0 0.0
      %1723 = vmatprep.subr.mxu0 0.0
      %1724 = vmatpush1.msra.mxu0 0.0
      %1725 = vmatprep.subr.mxu0 0.0
      %1726 = vmatpush1.msra.mxu0 0.0
      %1727 = vmatprep.subr.mxu0 0.0
      %1728 = vmatpush1.msra.mxu0 0.0
      %1729 = vmatprep.subr.mxu0 0.0
      %1730 = vmatpush1.msra.mxu0 0.0
      %1731 = vmatprep.subr.mxu0 0.0
      %1732 = vmatpush1.msra.mxu0 0.0
      %1733 = vmatprep.subr.mxu0 0.0
      %1734 = vmatpush1.msra.mxu0 0.0
      %1735 = vmatprep.subr.mxu0 0.0
      %1736 = vmatpush1.msra.mxu0 0.0
      %1737 = vmatprep.subr.mxu0 0.0
      %1738 = vmatpush1.msra.mxu0 0.0
      %1739 = vmatprep.subr.mxu0 0.0
      %1740 = vmatpush1.msra.mxu0 0.0
      %1741 = vmatprep.subr.mxu0 0.0
      %1742 = vmatpush1.msra.mxu0 0.0
      %1743 = vmatprep.subr.mxu0 0.0
      %1744 = vmatpush1.msra.mxu0 0.0
      %1745 = vmatprep.subr.mxu0 0.0
      %1746 = vmatpush1.msra.mxu0 0.0
      %1747 = vmatprep.subr.mxu0 0.0
      %1748 = vmatpush1.msra.mxu0 0.0
      %1749 = vmatprep.subr.mxu0 0.0
      %1750 = vmatpush1.msra.mxu0 0.0
      %1751 = vmatprep.subr.mxu0 0.0
      %1752 = vmatpush1.msra.mxu0 0.0
      %1753 = vmatprep.subr.mxu0 0.0
      %1754 = vmatpush1.msra.mxu0 0.0
      %1755 = vmatprep.subr.mxu0 0.0
      %1756 = vmatpush1.msra.mxu0 0.0
      %1757 = vmatprep.subr.mxu0 0.0
      %1758 = vmatpush1.msra.mxu0 0.0
      %1759 = vmatprep.subr.mxu0 0.0
      %1760 = vmatpush1.msra.mxu0 0.0
      %1761 = vmatprep.subr.mxu0 0.0
      %1762 = vmatpush1.msra.mxu0 0.0
      %1763 = vmatprep.subr.mxu0 0.0
      %1764 = vmatpush1.msra.mxu0 0.0
      %1765 = vmatprep.subr.mxu0 0.0
      %1766 = vmatpush1.msra.mxu0 0.0
      %1767 = vmatprep.subr.mxu0 0.0
      %1768 = vmatpush1.msra.mxu0 0.0
      %1769 = vmatprep.subr.mxu0 0.0
      %1770 = vmatpush1.msra.mxu0 0.0
      %1771 = vmatprep.subr.mxu0 0.0
      %1772 = vmatpush1.msra.mxu0 0.0
      %1773 = vmatprep.subr.mxu0 0.0
      %1774 = vmatpush1.msra.mxu0 0.0
      %1775 = vmatprep.mubr.f32.mxu0 0.0
      %1776 = vmatmul.mubr.f32.gmra.mrb[0].mxu0 %v1705
      %v1777 = vpop.f32.mrb[0].mxu0
      %v1778 = vadd.f32 0.0, %v1777
      %v1779 = vpop.f32.mrb[0].mxu0
      %v1780 = vadd.f32 0.0, %v1779
      %1781 = vdwg.mxu0
      %v1784 = vcombine.high %v1685, %v1685
      %1785 = vrot.lane.b32.xlu0 %v1685, 15
      %v1786 = vpop.permute.xlu0 %1785
      %1787 = vrot.lane.b32.xlu0 %v1784, 15
      %v1788 = vpop.permute.xlu0 %1787
      %1789 = vrot.lane.b32.xlu0 %v1686, 15
      %v1790 = vpop.permute.xlu0 %1789
      %v1791 = vsel %vm934, %v1786, %v1788
      %v1792 = vsel %vm934, %v1788, %v1790
      %v1794 = vsel %vm281, %v1688, 0
      %v1796 = vsel %vm285, %v1791, 0
      %v1798 = vsel %vm285, %v1792, 0
      %1800 = vmatprep.subr.mxu0 %v1798
      %1801 = vmatpush1.msra.mxu0 %v1796
      %1802 = vmatprep.subr.mxu0 0.0
      %1803 = vmatpush1.msra.mxu0 0.0
      %1804 = vmatprep.subr.mxu0 0.0
      %1805 = vmatpush1.msra.mxu0 0.0
      %1806 = vmatprep.subr.mxu0 0.0
      %1807 = vmatpush1.msra.mxu0 0.0
      %1808 = vmatprep.subr.mxu0 0.0
      %1809 = vmatpush1.msra.mxu0 0.0
      %1810 = vmatprep.subr.mxu0 0.0
      %1811 = vmatpush1.msra.mxu0 0.0
      %1812 = vmatprep.subr.mxu0 0.0
      %1813 = vmatpush1.msra.mxu0 0.0
      %1814 = vmatprep.subr.mxu0 0.0
      %1815 = vmatpush1.msra.mxu0 0.0
      %1816 = vmatprep.subr.mxu0 0.0
      %1817 = vmatpush1.msra.mxu0 0.0
      %1818 = vmatprep.subr.mxu0 0.0
      %1819 = vmatpush1.msra.mxu0 0.0
      %1820 = vmatprep.subr.mxu0 0.0
      %1821 = vmatpush1.msra.mxu0 0.0
      %1822 = vmatprep.subr.mxu0 0.0
      %1823 = vmatpush1.msra.mxu0 0.0
      %1824 = vmatprep.subr.mxu0 0.0
      %1825 = vmatpush1.msra.mxu0 0.0
      %1826 = vmatprep.subr.mxu0 0.0
      %1827 = vmatpush1.msra.mxu0 0.0
      %1828 = vmatprep.subr.mxu0 0.0
      %1829 = vmatpush1.msra.mxu0 0.0
      %1830 = vmatprep.subr.mxu0 0.0
      %1831 = vmatpush1.msra.mxu0 0.0
      %1832 = vmatprep.subr.mxu0 0.0
      %1833 = vmatpush1.msra.mxu0 0.0
      %1834 = vmatprep.subr.mxu0 0.0
      %1835 = vmatpush1.msra.mxu0 0.0
      %1836 = vmatprep.subr.mxu0 0.0
      %1837 = vmatpush1.msra.mxu0 0.0
      %1838 = vmatprep.subr.mxu0 0.0
      %1839 = vmatpush1.msra.mxu0 0.0
      %1840 = vmatprep.subr.mxu0 0.0
      %1841 = vmatpush1.msra.mxu0 0.0
      %1842 = vmatprep.subr.mxu0 0.0
      %1843 = vmatpush1.msra.mxu0 0.0
      %1844 = vmatprep.subr.mxu0 0.0
      %1845 = vmatpush1.msra.mxu0 0.0
      %1846 = vmatprep.subr.mxu0 0.0
      %1847 = vmatpush1.msra.mxu0 0.0
      %1848 = vmatprep.subr.mxu0 0.0
      %1849 = vmatpush1.msra.mxu0 0.0
      %1850 = vmatprep.subr.mxu0 0.0
      %1851 = vmatpush1.msra.mxu0 0.0
      %1852 = vmatprep.subr.mxu0 0.0
      %1853 = vmatpush1.msra.mxu0 0.0
      %1854 = vmatprep.subr.mxu0 0.0
      %1855 = vmatpush1.msra.mxu0 0.0
      %1856 = vmatprep.subr.mxu0 0.0
      %1857 = vmatpush1.msra.mxu0 0.0
      %1858 = vmatprep.subr.mxu0 0.0
      %1859 = vmatpush1.msra.mxu0 0.0
      %1860 = vmatprep.subr.mxu0 0.0
      %1861 = vmatpush1.msra.mxu0 0.0
      %1862 = vmatprep.subr.mxu0 0.0
      %1863 = vmatpush1.msra.mxu0 0.0
      %1864 = vmatprep.mubr.f32.mxu0 0.0
      %1865 = vmatmul.mubr.f32.gmra.mrb[0].mxu0 %v1794
      %v1866 = vpop.f32.mrb[0].mxu0
      %v1867 = vadd.f32 %v1778, %v1866
      %v1868 = vpop.f32.mrb[0].mxu0
      %v1869 = vadd.f32 %v1780, %v1868
      %1870 = vdwg.mxu0
      %v1871 = vld [vmem:[#allocation2 + $0x4] sm:$0xff]
      %v1872 = vld [vmem:[#allocation2 + $0xc] sm:$0xf]
      %s1873 = scalar_lea.vmem %s3, 32
      %v1874 = vld [vmem:[%s1873] sm:$0xf]
      %v1877 = vcombine.high %v1871, %v1871
      %1878 = vrot.lane.b32.xlu0 %v1871, 111
      %v1879 = vpop.permute.xlu0 %1878
      %1880 = vrot.lane.b32.xlu0 %v1877, 111
      %v1881 = vpop.permute.xlu0 %1880
      %1882 = vrot.lane.b32.xlu0 %v1872, 111
      %v1883 = vpop.permute.xlu0 %1882
      %v1884 = vsel %vm1028, %v1879, %v1881
      %v1885 = vsel %vm1028, %v1881, %v1883
      %v1887 = vsel %vm281, %v1874, 0
      %v1889 = vsel %vm285, %v1884, 0
      %v1891 = vsel %vm285, %v1885, 0
      %1893 = vmatprep.subr.mxu0 %v1891
      %1894 = vmatpush1.msra.mxu0 %v1889
      %1895 = vmatprep.subr.mxu0 0.0
      %1896 = vmatpush1.msra.mxu0 0.0
      %1897 = vmatprep.subr.mxu0 0.0
      %1898 = vmatpush1.msra.mxu0 0.0
      %1899 = vmatprep.subr.mxu0 0.0
      %1900 = vmatpush1.msra.mxu0 0.0
      %1901 = vmatprep.subr.mxu0 0.0
      %1902 = vmatpush1.msra.mxu0 0.0
      %1903 = vmatprep.subr.mxu0 0.0
      %1904 = vmatpush1.msra.mxu0 0.0
      %1905 = vmatprep.subr.mxu0 0.0
      %1906 = vmatpush1.msra.mxu0 0.0
      %1907 = vmatprep.subr.mxu0 0.0
      %1908 = vmatpush1.msra.mxu0 0.0
      %1909 = vmatprep.subr.mxu0 0.0
      %1910 = vmatpush1.msra.mxu0 0.0
      %1911 = vmatprep.subr.mxu0 0.0
      %1912 = vmatpush1.msra.mxu0 0.0
      %1913 = vmatprep.subr.mxu0 0.0
      %1914 = vmatpush1.msra.mxu0 0.0
      %1915 = vmatprep.subr.mxu0 0.0
      %1916 = vmatpush1.msra.mxu0 0.0
      %1917 = vmatprep.subr.mxu0 0.0
      %1918 = vmatpush1.msra.mxu0 0.0
      %1919 = vmatprep.subr.mxu0 0.0
      %1920 = vmatpush1.msra.mxu0 0.0
      %1921 = vmatprep.subr.mxu0 0.0
      %1922 = vmatpush1.msra.mxu0 0.0
      %1923 = vmatprep.subr.mxu0 0.0
      %1924 = vmatpush1.msra.mxu0 0.0
      %1925 = vmatprep.subr.mxu0 0.0
      %1926 = vmatpush1.msra.mxu0 0.0
      %1927 = vmatprep.subr.mxu0 0.0
      %1928 = vmatpush1.msra.mxu0 0.0
      %1929 = vmatprep.subr.mxu0 0.0
      %1930 = vmatpush1.msra.mxu0 0.0
      %1931 = vmatprep.subr.mxu0 0.0
      %1932 = vmatpush1.msra.mxu0 0.0
      %1933 = vmatprep.subr.mxu0 0.0
      %1934 = vmatpush1.msra.mxu0 0.0
      %1935 = vmatprep.subr.mxu0 0.0
      %1936 = vmatpush1.msra.mxu0 0.0
      %1937 = vmatprep.subr.mxu0 0.0
      %1938 = vmatpush1.msra.mxu0 0.0
      %1939 = vmatprep.subr.mxu0 0.0
      %1940 = vmatpush1.msra.mxu0 0.0
      %1941 = vmatprep.subr.mxu0 0.0
      %1942 = vmatpush1.msra.mxu0 0.0
      %1943 = vmatprep.subr.mxu0 0.0
      %1944 = vmatpush1.msra.mxu0 0.0
      %1945 = vmatprep.subr.mxu0 0.0
      %1946 = vmatpush1.msra.mxu0 0.0
      %1947 = vmatprep.subr.mxu0 0.0
      %1948 = vmatpush1.msra.mxu0 0.0
      %1949 = vmatprep.subr.mxu0 0.0
      %1950 = vmatpush1.msra.mxu0 0.0
      %1951 = vmatprep.subr.mxu0 0.0
      %1952 = vmatpush1.msra.mxu0 0.0
      %1953 = vmatprep.subr.mxu0 0.0
      %1954 = vmatpush1.msra.mxu0 0.0
      %1955 = vmatprep.subr.mxu0 0.0
      %1956 = vmatpush1.msra.mxu0 0.0
      %1957 = vmatprep.mubr.f32.mxu0 0.0
      %1958 = vmatmul.mubr.f32.gmra.mrb[0].mxu0 %v1887
      %v1959 = vpop.f32.mrb[0].mxu0
      %v1960 = vadd.f32 0.0, %v1959
      %v1961 = vpop.f32.mrb[0].mxu0
      %v1962 = vadd.f32 0.0, %v1961
      %1963 = vdwg.mxu0
      %v1964 = vadd.f32 %v1867, %v1960
      %v1965 = vadd.f32 %v1869, %v1962
      %v1966 = vsel %vm1113, %v1964, 0.0
      %v1967 = vsel %vm1114, %v1965, 0.0
      %v1968 = vadd.f32 %v1683, %v1966
      %v1969 = vadd.f32 %v1684, %v1967
      %1971 = vset.pattern.permute.xlu0 0
      %1972 = vperm.xlu0 %1971, %v257
      %v1973 = vpop.permute.xlu0 %1972
      %v1975 = vadd.f32 %v1968, %v1973
      %v1976 = vadd.f32 %v1969, %v1973
      %v1978 = vcombine.high %v258, %v258
      %v1980 = vadd.f32 %v1975, %v258
      %v1981 = vadd.f32 %v1976, %v1978
      %v1984 = vcombine.low %v1980, %v1981
      %1986 = vst [vmem:[%s224] sm:$0xff] %v1984
      %p1987 = scmp.lt.s32.totalorder %s16, 1
      %s1988 = scalar_select %p1987, %s16, 1
      %s1989 = smul.addr %s1988, 2
      %s1990 = smul.addr %s1989, 4
      %s1991 = scalar_lea.vmem %s5, %s1990
      // Predicated region
      $region41: #{impala_residual_block.1} parent=39 // pred_check
        %p1992 = pneg %p144
      $region42: #{impala_residual_block.1} parent=39 // pred_check_branch
        %1994 = sbr.rel (%p1992) target = $region44
      $region43: #{impala_residual_block.1} parent=39 // pred_region
        _
      $region44: #{impala_residual_block.1} parent=39 // pred_fallthru
        _
    $region40: #{impala_residual_block.1} parent=5 // pred_fallthru
      _
    %p1995 = scmp.le.s32.totalorder 2, %s11
    // Predicated region
    $region45: #{impala_residual_block.1} parent=5 // pred_check
      %p1996 = pneg %p1995
    $region46: #{impala_residual_block.1} parent=5 // pred_check_branch
      %1998 = sbr.rel (%p1996) target = $region48
    $region47: #{impala_residual_block.1} parent=5 // pred_region
      %s1999 = ssub.s32 %s11, 2
      // Predicated region
      $region49: #{impala_residual_block.1} parent=47 // pred_check
        %p2000 = pneg %p150
      $region50: #{impala_residual_block.1} parent=47 // pred_check_branch
        %2002 = sbr.rel (%p2000) target = $region52
      $region51: #{impala_residual_block.1} parent=47 // pred_region
        %p2003 = scmp.lt.s32.totalorder %s17, 1
        %s2004 = scalar_select %p2003, %s17, 1
        %s2005 = smul.addr %s2004, 2
        %s2006 = smul.addr %s2005, 4
        %s2007 = scalar_lea.vmem %s5, %s2006
      $region52: #{impala_residual_block.1} parent=47 // pred_fallthru
        _
    $region48: #{impala_residual_block.1} parent=5 // pred_fallthru
      _
  $region6: #{impala_residual_block.1} parent=0 // loop_footer
    %s15 = sadd.s32 1, %s11
  $region7: #{impala_residual_block.1} parent=0 // loop_footer_branch
    %10 = sbr.rel target = $region3
  $region8: #{impala_residual_block.1} parent=0 // loop_exit
    _

</llo_original>
